<compile_context>
chip_gen: v6e
topology: v6e:2x2x1
jax: 0.10.0
libtpu: 0.0.40
codegen_flags: <defaults>
</compile_context>

<pallas_src>
import functools

import jax
import jax.numpy as jnp
from jax.experimental import pallas as pl
from jax.experimental.pallas import tpu as pltpu

LANE = 128
SUBLANE = 8


def _round_up(n, m):
    return ((n + m - 1) // m) * m


# ----------------------------------------------------------------------------
# Single fused forward kernel
# ----------------------------------------------------------------------------

def _net_fwd_kernel(x_ref, eps_ref,
                    xw_ref, btk_w_ref, dec1_w_ref, dec2_w_ref,
                    cls_wmuz_ref, bias_ref,
                    latent_ref, r_ref, c_ref,
                    *, hidden, head, cls_pad, in_dim, boff):
    x = x_ref[...]                                                  # bf16 [B, In]

    # ---- fused x-matmul: one K=in_dim MXU pass -> [ h_pre | c_x ] -----------
    hx = jnp.dot(x, xw_ref[...], preferred_element_type=jnp.float32)
    h = jnp.maximum(hx[:, :hidden] + bias_ref[:, boff["enc"]:boff["enc"] + hidden], 0.0)
    cx = hx[:, hidden:]                                             # f32 [B, cls_pad]
    h_bf = h.astype(jnp.bfloat16)

    # ---- bottleneck: lane-aligned heads [ mu(128) | logvar(128) ] -----------
    ml = jnp.dot(h_bf, btk_w_ref[...], preferred_element_type=jnp.float32)
    ml = ml + bias_ref[:, boff["btk"]:boff["btk"] + 2 * head]
    mu = ml[:, :head]
    lv = ml[:, head:]
    # Reparameterize in f32.  Padded lanes: mu = lv = 0 and eps = 0 -> z = 0.
    z = mu + eps_ref[...] * jnp.exp(0.5 * lv)                       # f32 [B, head]
    z_bf = z.astype(jnp.bfloat16)
    mu_bf = mu.astype(jnp.bfloat16)

    # ---- decoder: r = sigmoid(relu(z @ Wd1 + bd1) @ Wd2 + bd2) ---------------
    d = jnp.dot(z_bf, dec1_w_ref[...], preferred_element_type=jnp.float32)
    d = jnp.maximum(d + bias_ref[:, boff["dec1"]:boff["dec1"] + hidden], 0.0)
    d_bf = d.astype(jnp.bfloat16)
    r = jnp.dot(d_bf, dec2_w_ref[...], preferred_element_type=jnp.float32)
    r = jax.nn.sigmoid(r + bias_ref[:, boff["dec2"]:boff["dec2"] + in_dim])

    # ---- classifier (concat-free wrt HBM): c = c_x + [mu|z] @ Wmuz + b -------
    muz = jnp.concatenate([mu_bf, z_bf], axis=-1)                   # [B, 2*head]
    c = cx + jnp.dot(muz, cls_wmuz_ref[...], preferred_element_type=jnp.float32)
    c = c + bias_ref[:, boff["cls"]:boff["cls"] + cls_pad]

    # ---- lane-dense outputs: slab = [ z(128) | mu(128) | logvar(128) ] -------
    latent_ref[...] = jnp.concatenate([z, mu, lv], axis=-1).astype(latent_ref.dtype)
    r_ref[...] = r.astype(r_ref.dtype)
    c_ref[...] = c.astype(c_ref.dtype)


# ----------------------------------------------------------------------------
# Parameter init (deterministic) — bf16 weights, packed f32 biases
# ----------------------------------------------------------------------------

def init_params(key, in_dim, hidden_dim, latent_dim, num_classes):
    assert in_dim % LANE == 0 and hidden_dim % LANE == 0, "need 128-aligned dims"
    head = _round_up(latent_dim, LANE)        # lane-padded latent head width (128)
    cls_pad = _round_up(num_classes, LANE)    # lane-padded logit width (128)
    scale = 0.02
    ks = jax.random.split(key, 14)

    def nrm(k, shape):
        return scale * jax.random.normal(k, shape, jnp.float32)

    # Fused x weight: cols [0, hidden) = encoder, cols [hidden, hidden+C) = classifier-x.
    xw = jnp.zeros((in_dim, hidden_dim + cls_pad), jnp.float32)
    xw = xw.at[:, :hidden_dim].set(nrm(ks[0], (in_dim, hidden_dim)))
    xw = xw.at[:, hidden_dim:hidden_dim + num_classes].set(nrm(ks[1], (in_dim, num_classes)))

    # Bottleneck heads, lane-padded: cols [0, L) = mu, cols [head, head+L) = logvar.
    btk = jnp.zeros((hidden_dim, 2 * head), jnp.float32)
    btk = btk.at[:, :latent_dim].set(nrm(ks[2], (hidden_dim, latent_dim)))
    btk = btk.at[:, head:head + latent_dim].set(nrm(ks[3], (hidden_dim, latent_dim)))

    # Decoder.
    dec1 = jnp.zeros((head, hidden_dim), jnp.float32)
    dec1 = dec1.at[:latent_dim, :].set(nrm(ks[4], (latent_dim, hidden_dim)))
    dec2 = nrm(ks[5], (hidden_dim, in_dim))

    # Classifier [mu | z] weight: rows [0, L) = W_mu, rows [head, head+L) = W_z.
    clsw = jnp.zeros((2 * head, cls_pad), jnp.float32)
    clsw = clsw.at[:latent_dim, :num_classes].set(nrm(ks[6], (latent_dim, num_classes)))
    clsw = clsw.at[head:head + latent_dim, :num_classes].set(nrm(ks[7], (latent_dim, num_classes)))

    # Packed biases: [ enc | btk(mu,logvar) | dec1 | dec2 | cls ].  Every segment
    # width is a multiple of 128, so all in-kernel slices are lane-aligned.
    boff = {"enc": 0,
            "btk": hidden_dim,
            "dec1": hidden_dim + 2 * head,
            "dec2": hidden_dim + 2 * head + hidden_dim,
            "cls": hidden_dim + 2 * head + hidden_dim + in_dim}
    total = boff["cls"] + cls_pad
    bscale = 0.01
    bias = jnp.zeros((1, total), jnp.float32)
    bias = bias.at[:, boff["enc"]:boff["enc"] + hidden_dim].set(
        bscale * jax.random.normal(ks[8], (1, hidden_dim), jnp.float32))
    bias = bias.at[:, boff["btk"]:boff["btk"] + latent_dim].set(
        bscale * jax.random.normal(ks[9], (1, latent_dim), jnp.float32))
    bias = bias.at[:, boff["btk"] + head:boff["btk"] + head + latent_dim].set(
        bscale * jax.random.normal(ks[10], (1, latent_dim), jnp.float32))
    bias = bias.at[:, boff["dec1"]:boff["dec1"] + hidden_dim].set(
        bscale * jax.random.normal(ks[11], (1, hidden_dim), jnp.float32))
    bias = bias.at[:, boff["dec2"]:boff["dec2"] + in_dim].set(
        bscale * jax.random.normal(ks[12], (1, in_dim), jnp.float32))
    bias = bias.at[:, boff["cls"]:boff["cls"] + num_classes].set(
        bscale * jax.random.normal(ks[13], (1, num_classes), jnp.float32))
    # NOTE: padded bias lanes stay exactly zero (keeps padded mu/logvar/z/c lanes zero).

    return {
        "xw": xw.astype(jnp.bfloat16),
        "btk_w": btk.astype(jnp.bfloat16),
        "dec1_w": dec1.astype(jnp.bfloat16),
        "dec2_w": dec2.astype(jnp.bfloat16),
        "cls_wmuz": clsw.astype(jnp.bfloat16),
        "bias": bias,
        # static config
        "in_dim": in_dim, "hidden_dim": hidden_dim, "latent_dim": latent_dim,
        "num_classes": num_classes, "head": head, "cls_pad": cls_pad, "boff": boff,
    }


# ----------------------------------------------------------------------------
# Forward glue (mirrors Net.forward) and a pure-JAX reference
# ----------------------------------------------------------------------------

def net_forward(params, x_nchw, eps, classify=True, reconstruct=True):
    """Returns (latent=(z, mu, logvar), r, c) like PyTorch Net.forward."""
    B = x_nchw.shape[0]
    in_dim, hidden = params["in_dim"], params["hidden_dim"]
    L, head = params["latent_dim"], params["head"]
    cls_pad, num_classes = params["cls_pad"], params["num_classes"]
    boff = params["boff"]

    Bp = max(SUBLANE, _round_up(B, SUBLANE))          # sublane-full batch
    x_flat = x_nchw.reshape(B, -1).astype(jnp.bfloat16)
    x_pad = jnp.zeros((Bp, in_dim), jnp.bfloat16).at[:B].set(x_flat)
    eps_pad = jnp.zeros((Bp, head), jnp.float32).at[:B, :L].set(eps.astype(jnp.float32))

    vmem = pl.BlockSpec(memory_space=pltpu.MemorySpace.VMEM)
    kernel = functools.partial(_net_fwd_kernel, hidden=hidden, head=head,
                               cls_pad=cls_pad, in_dim=in_dim, boff=boff)

    latent_slab, r, c_full = pl.pallas_call(
        kernel,
        out_shape=(
            jax.ShapeDtypeStruct((Bp, 3 * head), jnp.float32),   # [z | mu | logvar]
            jax.ShapeDtypeStruct((Bp, in_dim), jnp.float32),     # reconstruction
            jax.ShapeDtypeStruct((Bp, cls_pad), jnp.float32),    # padded logits
        ),
        in_specs=[vmem] * 8,
        out_specs=(vmem, vmem, vmem),
    )(x_pad, eps_pad,
      params["xw"], params["btk_w"], params["dec1_w"], params["dec2_w"],
      params["cls_wmuz"], params["bias"])

    z = latent_slab[:B, :L]
    mu = latent_slab[:B, head:head + L]
    logvar = latent_slab[:B, 2 * head:2 * head + L]
    latent = (z, mu, logvar)
    r_out = r[:B] if reconstruct else None
    c_out = c_full[:B, :num_classes] if classify else None
    return latent, r_out, c_out


def net_forward_ref(params, x_nchw, eps):
    """f32 reference replicating the kernel's bf16 matmul-path rounding."""
    B = x_nchw.shape[0]
    in_dim, hidden = params["in_dim"], params["hidden_dim"]
    L, head = params["latent_dim"], params["head"]
    cls_pad, num_classes = params["cls_pad"], params["num_classes"]
    boff, bias = params["boff"], params["bias"]

    def seg(name, w):
        return bias[:, boff[name]:boff[name] + w]

    def f32(w):
        return w.astype(jnp.float32)

    x = x_nchw.reshape(B, -1).astype(jnp.bfloat16).astype(jnp.float32)
    hx = x @ f32(params["xw"])
    h = jnp.maximum(hx[:, :hidden] + seg("enc", hidden), 0.0)
    cx = hx[:, hidden:]
    h = h.astype(jnp.bfloat16).astype(jnp.float32)
    ml = h @ f32(params["btk_w"]) + seg("btk", 2 * head)
    mu, lv = ml[:, :head], ml[:, head:]
    eps_pad = jnp.zeros((B, head), jnp.float32).at[:, :L].set(eps.astype(jnp.float32))
    z = mu + eps_pad * jnp.exp(0.5 * lv)
    zb = z.astype(jnp.bfloat16).astype(jnp.float32)
    mub = mu.astype(jnp.bfloat16).astype(jnp.float32)
    d = jnp.maximum(zb @ f32(params["dec1_w"]) + seg("dec1", hidden), 0.0)
    d = d.astype(jnp.bfloat16).astype(jnp.float32)
    r = jax.nn.sigmoid(d @ f32(params["dec2_w"]) + seg("dec2", in_dim))
    c = cx + jnp.concatenate([mub, zb], -1) @ f32(params["cls_wmuz"]) + seg("cls", cls_pad)
    return (z[:, :L], mu[:, :L], lv[:, :L]), r, c[:, :num_classes]


# ----------------------------------------------------------------------------
# Driver
# ----------------------------------------------------------------------------

if __name__ == "__main__":
    key = jax.random.PRNGKey(0)
    k_x, k_eps, k_p = jax.random.split(key, 3)

    # Small shapes consistent with an image VAE: NCHW input.
    B, C, H, W = 2, 4, 16, 16
    in_dim = C * H * W          # 1024
    hidden_dim = 128
    latent_dim = 32
    num_classes = 10

    x = jax.random.normal(k_x, (B, C, H, W), jnp.float32)
    eps = jax.random.normal(k_eps, (B, latent_dim), jnp.float32)   # reparam noise
    params = init_params(k_p, in_dim, hidden_dim, latent_dim, num_classes)

    latent, r, c = net_forward(params, x, eps, classify=True, reconstruct=True)
    (z, mu, logvar) = latent
    jax.block_until_ready((z, mu, logvar, r, c))

    # ---- correctness vs. pure-JAX reference ----
    (z_r, mu_r, lv_r), r_r, c_r = net_forward_ref(params, x, eps)
    tol = dict(atol=2e-2, rtol=2e-2)
    assert bool(jnp.allclose(z, z_r, **tol))
    assert bool(jnp.allclose(mu, mu_r, **tol))
    assert bool(jnp.allclose(logvar, lv_r, **tol))
    assert bool(jnp.allclose(r, r_r, **tol))
    assert bool(jnp.allclose(c, c_r, **tol))

    # ---- light sanity checks ----
    assert z.shape == (B, latent_dim)
    assert mu.shape == (B, latent_dim)
    assert logvar.shape == (B, latent_dim)
    assert r.shape == (B, in_dim)
    assert c.shape == (B, num_classes)
    assert bool(jnp.all(jnp.isfinite(z)))
    assert bool(jnp.all((r >= 0.0) & (r <= 1.0)))   # sigmoid output range

    print("KERNEL_OK")
</pallas_src>

<mosaic_0001>
module attributes {stable_mosaic.version = 11 : i64} {
  func.func @_net_fwd_kernel(%arg0: memref<8x1024xbf16, #tpu.memory_space<vmem>>, %arg1: memref<8x128xf32, #tpu.memory_space<vmem>>, %arg2: memref<1024x256xbf16, #tpu.memory_space<vmem>>, %arg3: memref<128x256xbf16, #tpu.memory_space<vmem>>, %arg4: memref<128x128xbf16, #tpu.memory_space<vmem>>, %arg5: memref<128x1024xbf16, #tpu.memory_space<vmem>>, %arg6: memref<256x128xbf16, #tpu.memory_space<vmem>>, %arg7: memref<1x1664xf32, #tpu.memory_space<vmem>>, %arg8: memref<8x384xf32, #tpu.memory_space<vmem>>, %arg9: memref<8x1024xf32, #tpu.memory_space<vmem>>, %arg10: memref<8x128xf32, #tpu.memory_space<vmem>>) attributes {dimension_semantics = [], scalar_prefetch = 0 : i64, scratch_operands = 0 : i64, tpu.core_type = #tpu.core_type<tc>} {
    %c0 = arith.constant 0 : index
    %c0_0 = arith.constant 0 : index
    %0 = vector.load %arg0[%c0, %c0_0] : memref<8x1024xbf16, #tpu.memory_space<vmem>>, vector<8x1024xbf16>
    %c0_1 = arith.constant 0 : index
    %c0_2 = arith.constant 0 : index
    %1 = vector.load %arg2[%c0_1, %c0_2] : memref<1024x256xbf16, #tpu.memory_space<vmem>>, vector<1024x256xbf16>
    %cst = arith.constant dense<0.000000e+00> : vector<8x256xf32>
    %2 = tpu.matmul %0, %1, %cst {dimension_numbers = #tpu.dot_dimension_numbers<[1], [0], [0], [1], [0, 0, 1, 1], [], []>} : vector<8x1024xbf16>, vector<1024x256xbf16>, vector<8x256xf32> -> vector<8x256xf32>
    %3 = vector.extract_strided_slice %2 {offsets = [0, 0], sizes = [8, 128], strides = [1, 1]} : vector<8x256xf32> to vector<8x128xf32>
    %c0_3 = arith.constant 0 : index
    %c0_4 = arith.constant 0 : index
    %4 = vector.load %arg7[%c0_3, %c0_4] : memref<1x1664xf32, #tpu.memory_space<vmem>>, vector<1x128xf32>
    %5 = vector.broadcast %4 : vector<1x128xf32> to vector<8x128xf32>
    %6 = arith.addf %3, %5 : vector<8x128xf32>
    %cst_5 = arith.constant 0.000000e+00 : f32
    %7 = vector.broadcast %cst_5 : f32 to vector<8x128xf32>
    %8 = arith.maximumf %6, %7 : vector<8x128xf32>
    %9 = vector.extract_strided_slice %2 {offsets = [0, 128], sizes = [8, 128], strides = [1, 1]} : vector<8x256xf32> to vector<8x128xf32>
    %10 = arith.truncf %8 : vector<8x128xf32> to vector<8x128xbf16>
    %c0_6 = arith.constant 0 : index
    %c0_7 = arith.constant 0 : index
    %11 = vector.load %arg3[%c0_6, %c0_7] : memref<128x256xbf16, #tpu.memory_space<vmem>>, vector<128x256xbf16>
    %cst_8 = arith.constant dense<0.000000e+00> : vector<8x256xf32>
    %12 = tpu.matmul %10, %11, %cst_8 {dimension_numbers = #tpu.dot_dimension_numbers<[1], [0], [0], [1], [0, 0, 1, 1], [], []>} : vector<8x128xbf16>, vector<128x256xbf16>, vector<8x256xf32> -> vector<8x256xf32>
    %c0_9 = arith.constant 0 : index
    %c128 = arith.constant 128 : index
    %13 = vector.load %arg7[%c0_9, %c128] : memref<1x1664xf32, #tpu.memory_space<vmem>>, vector<1x256xf32>
    %14 = vector.broadcast %13 : vector<1x256xf32> to vector<8x256xf32>
    %15 = arith.addf %12, %14 : vector<8x256xf32>
    %16 = vector.extract_strided_slice %15 {offsets = [0, 0], sizes = [8, 128], strides = [1, 1]} : vector<8x256xf32> to vector<8x128xf32>
    %17 = vector.extract_strided_slice %15 {offsets = [0, 128], sizes = [8, 128], strides = [1, 1]} : vector<8x256xf32> to vector<8x128xf32>
    %c0_10 = arith.constant 0 : index
    %c0_11 = arith.constant 0 : index
    %18 = vector.load %arg1[%c0_10, %c0_11] : memref<8x128xf32, #tpu.memory_space<vmem>>, vector<8x128xf32>
    %cst_12 = arith.constant 5.000000e-01 : f32
    %19 = vector.broadcast %cst_12 : f32 to vector<8x128xf32>
    %20 = arith.mulf %19, %17 : vector<8x128xf32>
    %21 = math.exp %20 : vector<8x128xf32>
    %22 = arith.mulf %18, %21 : vector<8x128xf32>
    %23 = arith.addf %16, %22 : vector<8x128xf32>
    %24 = arith.truncf %23 : vector<8x128xf32> to vector<8x128xbf16>
    %25 = arith.truncf %16 : vector<8x128xf32> to vector<8x128xbf16>
    %c0_13 = arith.constant 0 : index
    %c0_14 = arith.constant 0 : index
    %26 = vector.load %arg4[%c0_13, %c0_14] : memref<128x128xbf16, #tpu.memory_space<vmem>>, vector<128x128xbf16>
    %cst_15 = arith.constant dense<0.000000e+00> : vector<8x128xf32>
    %27 = tpu.matmul %24, %26, %cst_15 {dimension_numbers = #tpu.dot_dimension_numbers<[1], [0], [0], [1], [0, 0, 1, 1], [], []>} : vector<8x128xbf16>, vector<128x128xbf16>, vector<8x128xf32> -> vector<8x128xf32>
    %c0_16 = arith.constant 0 : index
    %c384 = arith.constant 384 : index
    %28 = vector.load %arg7[%c0_16, %c384] : memref<1x1664xf32, #tpu.memory_space<vmem>>, vector<1x128xf32>
    %29 = vector.broadcast %28 : vector<1x128xf32> to vector<8x128xf32>
    %30 = arith.addf %27, %29 : vector<8x128xf32>
    %cst_17 = arith.constant 0.000000e+00 : f32
    %31 = vector.broadcast %cst_17 : f32 to vector<8x128xf32>
    %32 = arith.maximumf %30, %31 : vector<8x128xf32>
    %33 = arith.truncf %32 : vector<8x128xf32> to vector<8x128xbf16>
    %c0_18 = arith.constant 0 : index
    %c0_19 = arith.constant 0 : index
    %34 = vector.load %arg5[%c0_18, %c0_19] : memref<128x1024xbf16, #tpu.memory_space<vmem>>, vector<128x1024xbf16>
    %cst_20 = arith.constant dense<0.000000e+00> : vector<8x1024xf32>
    %35 = tpu.matmul %33, %34, %cst_20 {dimension_numbers = #tpu.dot_dimension_numbers<[1], [0], [0], [1], [0, 0, 1, 1], [], []>} : vector<8x128xbf16>, vector<128x1024xbf16>, vector<8x1024xf32> -> vector<8x1024xf32>
    %c0_21 = arith.constant 0 : index
    %c512 = arith.constant 512 : index
    %36 = vector.load %arg7[%c0_21, %c512] : memref<1x1664xf32, #tpu.memory_space<vmem>>, vector<1x1024xf32>
    %37 = vector.broadcast %36 : vector<1x1024xf32> to vector<8x1024xf32>
    %38 = arith.addf %35, %37 : vector<8x1024xf32>
    %39 = arith.negf %38 : vector<8x1024xf32>
    %40 = math.exp %39 : vector<8x1024xf32>
    %cst_22 = arith.constant 1.000000e+00 : f32
    %41 = vector.broadcast %cst_22 : f32 to vector<8x1024xf32>
    %42 = arith.addf %41, %40 : vector<8x1024xf32>
    %43 = arith.divf %41, %42 : vector<8x1024xf32>
    %44 = tpu.concatenate %25, %24 in 1 : vector<8x128xbf16>, vector<8x128xbf16> -> vector<8x256xbf16>
    %c0_23 = arith.constant 0 : index
    %c0_24 = arith.constant 0 : index
    %45 = vector.load %arg6[%c0_23, %c0_24] : memref<256x128xbf16, #tpu.memory_space<vmem>>, vector<256x128xbf16>
    %cst_25 = arith.constant dense<0.000000e+00> : vector<8x128xf32>
    %46 = tpu.matmul %44, %45, %cst_25 {dimension_numbers = #tpu.dot_dimension_numbers<[1], [0], [0], [1], [0, 0, 1, 1], [], []>} : vector<8x256xbf16>, vector<256x128xbf16>, vector<8x128xf32> -> vector<8x128xf32>
    %47 = arith.addf %9, %46 : vector<8x128xf32>
    %c0_26 = arith.constant 0 : index
    %c1536 = arith.constant 1536 : index
    %48 = vector.load %arg7[%c0_26, %c1536] : memref<1x1664xf32, #tpu.memory_space<vmem>>, vector<1x128xf32>
    %49 = vector.broadcast %48 : vector<1x128xf32> to vector<8x128xf32>
    %50 = arith.addf %47, %49 : vector<8x128xf32>
    %51 = tpu.concatenate %23, %16, %17 in 1 : vector<8x128xf32>, vector<8x128xf32>, vector<8x128xf32> -> vector<8x384xf32>
    %c0_27 = arith.constant 0 : index
    %c0_28 = arith.constant 0 : index
    %52 = vector.load %arg8[%c0_27, %c0_28] : memref<8x384xf32, #tpu.memory_space<vmem>>, vector<8x384xf32>
    tpu.vector_store %arg8[%c0_27, %c0_28], %51 {strides = array<i32>} : memref<8x384xf32, #tpu.memory_space<vmem>>, vector<8x384xf32>,
    %c0_29 = arith.constant 0 : index
    %c0_30 = arith.constant 0 : index
    %53 = vector.load %arg9[%c0_29, %c0_30] : memref<8x1024xf32, #tpu.memory_space<vmem>>, vector<8x1024xf32>
    tpu.vector_store %arg9[%c0_29, %c0_30], %43 {strides = array<i32>} : memref<8x1024xf32, #tpu.memory_space<vmem>>, vector<8x1024xf32>,
    %c0_31 = arith.constant 0 : index
    %c0_32 = arith.constant 0 : index
    %54 = vector.load %arg10[%c0_31, %c0_32] : memref<8x128xf32, #tpu.memory_space<vmem>>, vector<8x128xf32>
    tpu.vector_store %arg10[%c0_31, %c0_32], %50 {strides = array<i32>} : memref<8x128xf32, #tpu.memory_space<vmem>>, vector<8x128xf32>,
    return
  }
}

</mosaic_0001>

<llo_original>
// kernel: tpu_custom_call.1
$region0: #{tpu_custom_call.1}
  #allocation0 [shape = 'u32[]', space=smem, size = 0x4, offset = 0x4, fixed_abs, tag = 'smem constant byte address 0x4 - core index']
  #allocation1 [shape = 'u32[144,128]{1,0:T(1,128)}', space=vmem, size = 0x12000, scoped, tag = 'internal scratch']
  %s0 = inlined_call_operand.hbm [shape: bf16[8,1024], index: 0, kind: input, shape index: {}]
  %s1 = inlined_call_operand.hbm [shape: f32[8,128], index: 1, kind: input, shape index: {}]
  %s2 = inlined_call_operand.hbm [shape: bf16[1024,256], index: 2, kind: input, shape index: {}]
  %s3 = inlined_call_operand.hbm [shape: bf16[128,256], index: 3, kind: input, shape index: {}]
  %s4 = inlined_call_operand.hbm [shape: bf16[128,128], index: 4, kind: input, shape index: {}]
  %s5 = inlined_call_operand.hbm [shape: bf16[128,1024], index: 5, kind: input, shape index: {}]
  %s6 = inlined_call_operand.hbm [shape: bf16[256,128], index: 6, kind: input, shape index: {}]
  %s7 = inlined_call_operand.hbm [shape: f32[1,1664], index: 7, kind: input, shape index: {}]
  %s8 = inlined_call_operand.hbm [shape: f32[8,384], index: 8, kind: output, shape index: {0}]
  %s9 = inlined_call_operand.hbm [shape: f32[8,1024], index: 9, kind: output, shape index: {1}]
  %s10 = inlined_call_operand.hbm [shape: f32[8,128], index: 10, kind: output, shape index: {2}]
  %11 = xla_tuple %s8, %s9, %s10
  %s12 = sld [smem:[#allocation0]]
  $region90: #{tpu_custom_call.1} parent=0
    _
  %s14 = ssub.s32 1, %s12
  %s15 = scalar_select 0, %s14, %s12
  $region1: #{tpu_custom_call.1} parent=0
    #allocation2 [shape = 'u8[16384]{0}', space=vmem, size = 0x4000, scoped, tag = 'input window, operand 0, single buffered']
    #allocation3 [shape = 's32[1]{0}', space=sflag, size = 0x4, scoped, tag = 'scoped memory for tpu_custom_call.1']
    #allocation4 [shape = 's32[1]{0}', space=sflag, size = 0x4, scoped, tag = 'scoped memory for tpu_custom_call.1']
    #allocation5 [shape = 'u8[4096]{0}', space=vmem, size = 0x1000, scoped, tag = 'input window, operand 1, single buffered']
    #allocation6 [shape = 's32[1]{0}', space=sflag, size = 0x4, scoped, tag = 'scoped memory for tpu_custom_call.1']
    #allocation7 [shape = 'u8[524288]{0}', space=vmem, size = 0x80000, scoped, tag = 'input window, operand 2, single buffered']
    #allocation8 [shape = 'u8[65536]{0}', space=vmem, size = 0x10000, scoped, tag = 'input window, operand 3, single buffered']
    #allocation9 [shape = 's32[1]{0}', space=sflag, size = 0x4, scoped, tag = 'scoped memory for tpu_custom_call.1']
    #allocation10 [shape = 'u8[32768]{0}', space=vmem, size = 0x8000, scoped, tag = 'input window, operand 4, single buffered']
    #allocation11 [shape = 'u8[262144]{0}', space=vmem, size = 0x40000, scoped, tag = 'input window, operand 5, single buffered']
    #allocation12 [shape = 's32[1]{0}', space=sflag, size = 0x4, scoped, tag = 'scoped memory for tpu_custom_call.1']
    #allocation13 [shape = 'u8[65536]{0}', space=vmem, size = 0x10000, scoped, tag = 'input window, operand 6, single buffered']
    #allocation14 [shape = 'u8[6656]{0}', space=vmem, size = 0x1c00, scoped, tag = 'input window, operand 7, single buffered']
    #allocation15 [shape = 's32[1]{0}', space=sflag, size = 0x4, scoped, tag = 'scoped memory for tpu_custom_call.1']
    #allocation16 [shape = 'u8[12288]{0}', space=vmem, size = 0x3000, scoped, tag = 'output window, operand 0, single buffered']
    #allocation17 [shape = 'u8[32768]{0}', space=vmem, size = 0x8000, scoped, tag = 'output window, operand 1, single buffered']
    #allocation18 [shape = 's32[1]{0}', space=sflag, size = 0x4, scoped, tag = 'scoped memory for tpu_custom_call.1']
    #allocation19 [shape = 'u8[4096]{0}', space=vmem, size = 0x1000, scoped, tag = 'output window, operand 2, single buffered']
    %16 = vsyncpa [#allocation3], 0
    %17 = vsyncpa [#allocation6], 0
    %18 = vsyncpa [#allocation9], 0
    %19 = vsyncpa [#allocation12], 0
    %20 = vsyncpa [#allocation15], 0
    %21 = vsyncpa [#allocation4], 0
    %22 = vsyncpa [#allocation18], 0
    // Predicated region
    $region2: #{tpu_custom_call.1} parent=1 // pred_check
      _
    $region3: #{tpu_custom_call.1} parent=1 // pred_check_branch
      %24 = sbr.rel (0) target = $region5
    $region4: #{tpu_custom_call.1} parent=1 // pred_region
      %s26 = ssub.s32 512, 512
      %27 = vsyncadd [#allocation3], %s26
      %s29 = sshll.u32 [#allocation2], 4
      %s30 = int_to_ptr.vmem [resolvable:$true] %s29
      %32 = dma.hbm_to_vmem [thread:$0]  %s0, 512, %s30, [#allocation3]
    $region5: #{tpu_custom_call.1} parent=1 // pred_fallthru
      _
    // Predicated region
    $region6: #{tpu_custom_call.1} parent=1 // pred_check
      _
    $region7: #{tpu_custom_call.1} parent=1 // pred_check_branch
      %34 = sbr.rel (0) target = $region9
    $region8: #{tpu_custom_call.1} parent=1 // pred_region
      %s36 = ssub.s32 128, 128
      %37 = vsyncadd [#allocation6], %s36
      %s39 = sshll.u32 [#allocation5], 4
      %s40 = int_to_ptr.vmem [resolvable:$true] %s39
      %42 = dma.hbm_to_vmem [thread:$0]  %s1, 128, %s40, [#allocation6]
    $region9: #{tpu_custom_call.1} parent=1 // pred_fallthru
      _
    // Predicated region
    $region10: #{tpu_custom_call.1} parent=1 // pred_check
      _
    $region11: #{tpu_custom_call.1} parent=1 // pred_check_branch
      %44 = sbr.rel (0) target = $region13
    $region12: #{tpu_custom_call.1} parent=1 // pred_region
      %s46 = ssub.s32 16384, 16384
      %47 = vsyncadd [#allocation6], %s46
      %s48 = sshll.u32 [#allocation7], 4
      %s49 = int_to_ptr.vmem [resolvable:$true] %s48
      %54 = dma.hbm_to_vmem [thread:$0]  %s2, 16384, %s49, [#allocation6], 128, 128, 8
    $region13: #{tpu_custom_call.1} parent=1 // pred_fallthru
      _
    // Predicated region
    $region14: #{tpu_custom_call.1} parent=1 // pred_check
      _
    $region15: #{tpu_custom_call.1} parent=1 // pred_check_branch
      %56 = sbr.rel (0) target = $region17
    $region16: #{tpu_custom_call.1} parent=1 // pred_region
      %s58 = ssub.s32 2048, 2048
      %59 = vsyncadd [#allocation9], %s58
      %s60 = sshll.u32 [#allocation8], 4
      %s61 = int_to_ptr.vmem [resolvable:$true] %s60
      %66 = dma.hbm_to_vmem [thread:$0]  %s3, 2048, %s61, [#allocation9], 128, 128, 8
    $region17: #{tpu_custom_call.1} parent=1 // pred_fallthru
      _
    // Predicated region
    $region18: #{tpu_custom_call.1} parent=1 // pred_check
      _
    $region19: #{tpu_custom_call.1} parent=1 // pred_check_branch
      %68 = sbr.rel (0) target = $region21
    $region20: #{tpu_custom_call.1} parent=1 // pred_region
      %s70 = ssub.s32 1024, 1024
      %71 = vsyncadd [#allocation9], %s70
      %s72 = sshll.u32 [#allocation10], 4
      %s73 = int_to_ptr.vmem [resolvable:$true] %s72
      %78 = dma.hbm_to_vmem [thread:$0]  %s4, 1024, %s73, [#allocation9], 64, 64, 4
    $region21: #{tpu_custom_call.1} parent=1 // pred_fallthru
      _
    // Predicated region
    $region22: #{tpu_custom_call.1} parent=1 // pred_check
      _
    $region23: #{tpu_custom_call.1} parent=1 // pred_check_branch
      %80 = sbr.rel (0) target = $region25
    $region24: #{tpu_custom_call.1} parent=1 // pred_region
      %s82 = ssub.s32 8192, 8192
      %83 = vsyncadd [#allocation12], %s82
      %s84 = sshll.u32 [#allocation11], 4
      %s85 = int_to_ptr.vmem [resolvable:$true] %s84
      %90 = dma.hbm_to_vmem [thread:$0]  %s5, 8192, %s85, [#allocation12], 512, 512, 32
    $region25: #{tpu_custom_call.1} parent=1 // pred_fallthru
      _
    // Predicated region
    $region26: #{tpu_custom_call.1} parent=1 // pred_check
      _
    $region27: #{tpu_custom_call.1} parent=1 // pred_check_branch
      %92 = sbr.rel (0) target = $region29
    $region28: #{tpu_custom_call.1} parent=1 // pred_region
      %s94 = ssub.s32 2048, 2048
      %95 = vsyncadd [#allocation12], %s94
      %s96 = sshll.u32 [#allocation13], 4
      %s97 = int_to_ptr.vmem [resolvable:$true] %s96
      %102 = dma.hbm_to_vmem [thread:$0]  %s6, 2048, %s97, [#allocation12], 64, 64, 4
    $region29: #{tpu_custom_call.1} parent=1 // pred_fallthru
      _
    // Predicated region
    $region30: #{tpu_custom_call.1} parent=1 // pred_check
      _
    $region31: #{tpu_custom_call.1} parent=1 // pred_check_branch
      %104 = sbr.rel (0) target = $region33
    $region32: #{tpu_custom_call.1} parent=1 // pred_region
      %s106 = ssub.s32 208, 208
      %107 = vsyncadd [#allocation15], %s106
      %s109 = sshll.u32 [#allocation14], 4
      %s110 = int_to_ptr.vmem [resolvable:$true] %s109
      %112 = dma.hbm_to_vmem [thread:$0]  %s7, 208, %s110, [#allocation15]
    $region33: #{tpu_custom_call.1} parent=1 // pred_fallthru
      _
    // Predicated region
    $region34: #{tpu_custom_call.1} parent=1 // pred_check
      _
    $region35: #{tpu_custom_call.1} parent=1 // pred_check_branch
      %114 = sbr.rel (0) target = $region37
    $region36: #{tpu_custom_call.1} parent=1 // pred_region
      %115 = dma.done [#allocation3], 512
    $region37: #{tpu_custom_call.1} parent=1 // pred_fallthru
      _
    // Predicated region
    $region38: #{tpu_custom_call.1} parent=1 // pred_check
      _
    $region39: #{tpu_custom_call.1} parent=1 // pred_check_branch
      %117 = sbr.rel (0) target = $region41
    $region40: #{tpu_custom_call.1} parent=1 // pred_region
      %118 = dma.done [#allocation6], 128
    $region41: #{tpu_custom_call.1} parent=1 // pred_fallthru
      _
    // Predicated region
    $region42: #{tpu_custom_call.1} parent=1 // pred_check
      _
    $region43: #{tpu_custom_call.1} parent=1 // pred_check_branch
      %120 = sbr.rel (0) target = $region45
    $region44: #{tpu_custom_call.1} parent=1 // pred_region
      %121 = dma.done [#allocation6], 16384
    $region45: #{tpu_custom_call.1} parent=1 // pred_fallthru
      _
    // Predicated region
    $region46: #{tpu_custom_call.1} parent=1 // pred_check
      _
    $region47: #{tpu_custom_call.1} parent=1 // pred_check_branch
      %123 = sbr.rel (0) target = $region49
    $region48: #{tpu_custom_call.1} parent=1 // pred_region
      %124 = dma.done [#allocation9], 2048
    $region49: #{tpu_custom_call.1} parent=1 // pred_fallthru
      _
    // Predicated region
    $region50: #{tpu_custom_call.1} parent=1 // pred_check
      _
    $region51: #{tpu_custom_call.1} parent=1 // pred_check_branch
      %126 = sbr.rel (0) target = $region53
    $region52: #{tpu_custom_call.1} parent=1 // pred_region
      %127 = dma.done [#allocation9], 1024
    $region53: #{tpu_custom_call.1} parent=1 // pred_fallthru
      _
    // Predicated region
    $region54: #{tpu_custom_call.1} parent=1 // pred_check
      _
    $region55: #{tpu_custom_call.1} parent=1 // pred_check_branch
      %129 = sbr.rel (0) target = $region57
    $region56: #{tpu_custom_call.1} parent=1 // pred_region
      %130 = dma.done [#allocation12], 8192
    $region57: #{tpu_custom_call.1} parent=1 // pred_fallthru
      _
    // Predicated region
    $region58: #{tpu_custom_call.1} parent=1 // pred_check
      _
    $region59: #{tpu_custom_call.1} parent=1 // pred_check_branch
      %132 = sbr.rel (0) target = $region61
    $region60: #{tpu_custom_call.1} parent=1 // pred_region
      %133 = dma.done [#allocation12], 2048
    $region61: #{tpu_custom_call.1} parent=1 // pred_fallthru
      _
    // Predicated region
    $region62: #{tpu_custom_call.1} parent=1 // pred_check
      _
    $region63: #{tpu_custom_call.1} parent=1 // pred_check_branch
      %135 = sbr.rel (0) target = $region65
    $region64: #{tpu_custom_call.1} parent=1 // pred_region
      %136 = dma.done [#allocation15], 208
    $region65: #{tpu_custom_call.1} parent=1 // pred_fallthru
      _
    %v138 = vld [vmem:[#allocation2] sm:$0xff]
    %v139 = vld [vmem:[#allocation2 + $0x8] sm:$0xff]
    %v140 = vld [vmem:[#allocation2 + $0x10] sm:$0xff]
    %v141 = vld [vmem:[#allocation2 + $0x18] sm:$0xff]
    %v142 = vld [vmem:[#allocation7] sm:$0xff]
    %v143 = vld [vmem:[#allocation7 + $0x8] sm:$0xff]
    %v144 = vld [vmem:[#allocation7 + $0x10] sm:$0xff]
    %v145 = vld [vmem:[#allocation7 + $0x18] sm:$0xff]
    %v146 = vld [vmem:[#allocation7 + $0x20] sm:$0xff]
    %v147 = vld [vmem:[#allocation7 + $0x28] sm:$0xff]
    %v148 = vld [vmem:[#allocation7 + $0x30] sm:$0xff]
    %v149 = vld [vmem:[#allocation7 + $0x38] sm:$0xff]
    %v150 = vld [vmem:[#allocation7 + $0x40] sm:$0xff]
    %v151 = vld [vmem:[#allocation7 + $0x48] sm:$0xff]
    %v152 = vld [vmem:[#allocation7 + $0x50] sm:$0xff]
    %v153 = vld [vmem:[#allocation7 + $0x58] sm:$0xff]
    %v154 = vld [vmem:[#allocation7 + $0x60] sm:$0xff]
    %v155 = vld [vmem:[#allocation7 + $0x68] sm:$0xff]
    %v156 = vld [vmem:[#allocation7 + $0x70] sm:$0xff]
    %v157 = vld [vmem:[#allocation7 + $0x78] sm:$0xff]
    %v158 = vld [vmem:[#allocation7 + $0x80] sm:$0xff]
    %v159 = vld [vmem:[#allocation7 + $0x88] sm:$0xff]
    %v160 = vld [vmem:[#allocation7 + $0x90] sm:$0xff]
    %v161 = vld [vmem:[#allocation7 + $0x98] sm:$0xff]
    %v162 = vld [vmem:[#allocation7 + $0xa0] sm:$0xff]
    %v163 = vld [vmem:[#allocation7 + $0xa8] sm:$0xff]
    %v164 = vld [vmem:[#allocation7 + $0xb0] sm:$0xff]
    %v165 = vld [vmem:[#allocation7 + $0xb8] sm:$0xff]
    %v166 = vld [vmem:[#allocation7 + $0xc0] sm:$0xff]
    %v167 = vld [vmem:[#allocation7 + $0xc8] sm:$0xff]
    %v168 = vld [vmem:[#allocation7 + $0xd0] sm:$0xff]
    %v169 = vld [vmem:[#allocation7 + $0xd8] sm:$0xff]
    %v170 = vld [vmem:[#allocation7 + $0xe0] sm:$0xff]
    %v171 = vld [vmem:[#allocation7 + $0xe8] sm:$0xff]
    %v172 = vld [vmem:[#allocation7 + $0xf0] sm:$0xff]
    %v173 = vld [vmem:[#allocation7 + $0xf8] sm:$0xff]
    %v174 = vld [vmem:[#allocation7 + $0x100] sm:$0xff]
    %v175 = vld [vmem:[#allocation7 + $0x108] sm:$0xff]
    %v176 = vld [vmem:[#allocation7 + $0x110] sm:$0xff]
    %v177 = vld [vmem:[#allocation7 + $0x118] sm:$0xff]
    %v178 = vld [vmem:[#allocation7 + $0x120] sm:$0xff]
    %v179 = vld [vmem:[#allocation7 + $0x128] sm:$0xff]
    %v180 = vld [vmem:[#allocation7 + $0x130] sm:$0xff]
    %v181 = vld [vmem:[#allocation7 + $0x138] sm:$0xff]
    %v182 = vld [vmem:[#allocation7 + $0x140] sm:$0xff]
    %v183 = vld [vmem:[#allocation7 + $0x148] sm:$0xff]
    %v184 = vld [vmem:[#allocation7 + $0x150] sm:$0xff]
    %v185 = vld [vmem:[#allocation7 + $0x158] sm:$0xff]
    %v186 = vld [vmem:[#allocation7 + $0x160] sm:$0xff]
    %v187 = vld [vmem:[#allocation7 + $0x168] sm:$0xff]
    %v188 = vld [vmem:[#allocation7 + $0x170] sm:$0xff]
    %v189 = vld [vmem:[#allocation7 + $0x178] sm:$0xff]
    %v190 = vld [vmem:[#allocation7 + $0x180] sm:$0xff]
    %v191 = vld [vmem:[#allocation7 + $0x188] sm:$0xff]
    %v192 = vld [vmem:[#allocation7 + $0x190] sm:$0xff]
    %v193 = vld [vmem:[#allocation7 + $0x198] sm:$0xff]
    %v194 = vld [vmem:[#allocation7 + $0x1a0] sm:$0xff]
    %v195 = vld [vmem:[#allocation7 + $0x1a8] sm:$0xff]
    %v196 = vld [vmem:[#allocation7 + $0x1b0] sm:$0xff]
    %v197 = vld [vmem:[#allocation7 + $0x1b8] sm:$0xff]
    %v198 = vld [vmem:[#allocation7 + $0x1c0] sm:$0xff]
    %v199 = vld [vmem:[#allocation7 + $0x1c8] sm:$0xff]
    %v200 = vld [vmem:[#allocation7 + $0x1d0] sm:$0xff]
    %v201 = vld [vmem:[#allocation7 + $0x1d8] sm:$0xff]
    %v202 = vld [vmem:[#allocation7 + $0x1e0] sm:$0xff]
    %v203 = vld [vmem:[#allocation7 + $0x1e8] sm:$0xff]
    %v204 = vld [vmem:[#allocation7 + $0x1f0] sm:$0xff]
    %v205 = vld [vmem:[#allocation7 + $0x1f8] sm:$0xff]
    %v206 = vld [vmem:[#allocation7 + $0x200] sm:$0xff]
    %v207 = vld [vmem:[#allocation7 + $0x208] sm:$0xff]
    %v208 = vld [vmem:[#allocation7 + $0x210] sm:$0xff]
    %v209 = vld [vmem:[#allocation7 + $0x218] sm:$0xff]
    %v210 = vld [vmem:[#allocation7 + $0x220] sm:$0xff]
    %v211 = vld [vmem:[#allocation7 + $0x228] sm:$0xff]
    %v212 = vld [vmem:[#allocation7 + $0x230] sm:$0xff]
    %v213 = vld [vmem:[#allocation7 + $0x238] sm:$0xff]
    %v214 = vld [vmem:[#allocation7 + $0x240] sm:$0xff]
    %v215 = vld [vmem:[#allocation7 + $0x248] sm:$0xff]
    %v216 = vld [vmem:[#allocation7 + $0x250] sm:$0xff]
    %v217 = vld [vmem:[#allocation7 + $0x258] sm:$0xff]
    %v218 = vld [vmem:[#allocation7 + $0x260] sm:$0xff]
    %v219 = vld [vmem:[#allocation7 + $0x268] sm:$0xff]
    %v220 = vld [vmem:[#allocation7 + $0x270] sm:$0xff]
    %v221 = vld [vmem:[#allocation7 + $0x278] sm:$0xff]
    %v222 = vld [vmem:[#allocation7 + $0x280] sm:$0xff]
    %v223 = vld [vmem:[#allocation7 + $0x288] sm:$0xff]
    %v224 = vld [vmem:[#allocation7 + $0x290] sm:$0xff]
    %v225 = vld [vmem:[#allocation7 + $0x298] sm:$0xff]
    %v226 = vld [vmem:[#allocation7 + $0x2a0] sm:$0xff]
    %v227 = vld [vmem:[#allocation7 + $0x2a8] sm:$0xff]
    %v228 = vld [vmem:[#allocation7 + $0x2b0] sm:$0xff]
    %v229 = vld [vmem:[#allocation7 + $0x2b8] sm:$0xff]
    %v230 = vld [vmem:[#allocation7 + $0x2c0] sm:$0xff]
    %v231 = vld [vmem:[#allocation7 + $0x2c8] sm:$0xff]
    %v232 = vld [vmem:[#allocation7 + $0x2d0] sm:$0xff]
    %v233 = vld [vmem:[#allocation7 + $0x2d8] sm:$0xff]
    %v234 = vld [vmem:[#allocation7 + $0x2e0] sm:$0xff]
    %v235 = vld [vmem:[#allocation7 + $0x2e8] sm:$0xff]
    %v236 = vld [vmem:[#allocation7 + $0x2f0] sm:$0xff]
    %v237 = vld [vmem:[#allocation7 + $0x2f8] sm:$0xff]
    %v238 = vld [vmem:[#allocation7 + $0x300] sm:$0xff]
    %v239 = vld [vmem:[#allocation7 + $0x308] sm:$0xff]
    %v240 = vld [vmem:[#allocation7 + $0x310] sm:$0xff]
    %v241 = vld [vmem:[#allocation7 + $0x318] sm:$0xff]
    %v242 = vld [vmem:[#allocation7 + $0x320] sm:$0xff]
    %v243 = vld [vmem:[#allocation7 + $0x328] sm:$0xff]
    %v244 = vld [vmem:[#allocation7 + $0x330] sm:$0xff]
    %v245 = vld [vmem:[#allocation7 + $0x338] sm:$0xff]
    %v246 = vld [vmem:[#allocation7 + $0x340] sm:$0xff]
    %v247 = vld [vmem:[#allocation7 + $0x348] sm:$0xff]
    %v248 = vld [vmem:[#allocation7 + $0x350] sm:$0xff]
    %v249 = vld [vmem:[#allocation7 + $0x358] sm:$0xff]
    %v250 = vld [vmem:[#allocation7 + $0x360] sm:$0xff]
    %v251 = vld [vmem:[#allocation7 + $0x368] sm:$0xff]
    %v252 = vld [vmem:[#allocation7 + $0x370] sm:$0xff]
    %v253 = vld [vmem:[#allocation7 + $0x378] sm:$0xff]
    %v254 = vld [vmem:[#allocation7 + $0x380] sm:$0xff]
    %v255 = vld [vmem:[#allocation7 + $0x388] sm:$0xff]
    %v256 = vld [vmem:[#allocation7 + $0x390] sm:$0xff]
    %v257 = vld [vmem:[#allocation7 + $0x398] sm:$0xff]
    %v258 = vld [vmem:[#allocation7 + $0x3a0] sm:$0xff]
    %v259 = vld [vmem:[#allocation7 + $0x3a8] sm:$0xff]
    %v260 = vld [vmem:[#allocation7 + $0x3b0] sm:$0xff]
    %v261 = vld [vmem:[#allocation7 + $0x3b8] sm:$0xff]
    %v262 = vld [vmem:[#allocation7 + $0x3c0] sm:$0xff]
    %v263 = vld [vmem:[#allocation7 + $0x3c8] sm:$0xff]
    %v264 = vld [vmem:[#allocation7 + $0x3d0] sm:$0xff]
    %v265 = vld [vmem:[#allocation7 + $0x3d8] sm:$0xff]
    %v266 = vld [vmem:[#allocation7 + $0x3e0] sm:$0xff]
    %v267 = vld [vmem:[#allocation7 + $0x3e8] sm:$0xff]
    %v268 = vld [vmem:[#allocation7 + $0x3f0] sm:$0xff]
    %v269 = vld [vmem:[#allocation7 + $0x3f8] sm:$0xff]
    %v274 = vunpack.c.l.b16 %v138
    %v275 = vunpack.c.h.b16 %v138
    %v276 = vunpack.c.l.b16 %v139
    %v277 = vunpack.c.h.b16 %v139
    %v278 = vunpack.c.l.b16 %v140
    %v279 = vunpack.c.h.b16 %v140
    %v280 = vunpack.c.l.b16 %v141
    %v281 = vunpack.c.h.b16 %v141
    %v282 = vpack.c.b16 %v274, %v274
    %v283 = vpack.c.b16 %v275, %v275
    %v284 = vpack.c.b16 %v276, %v276
    %v285 = vpack.c.b16 %v277, %v277
    %v286 = vpack.c.b16 %v278, %v278
    %v287 = vpack.c.b16 %v279, %v279
    %v288 = vpack.c.b16 %v280, %v280
    %v289 = vpack.c.b16 %v281, %v281
    %v426 = vunpack.c.l.b16 %v142
    %v427 = vunpack.c.h.b16 %v142
    %v428 = vunpack.c.l.b16 %v143
    %v429 = vunpack.c.h.b16 %v143
    %v430 = vunpack.c.l.b16 %v144
    %v431 = vunpack.c.h.b16 %v144
    %v432 = vunpack.c.l.b16 %v145
    %v433 = vunpack.c.h.b16 %v145
    %v434 = vunpack.c.l.b16 %v146
    %v435 = vunpack.c.h.b16 %v146
    %v436 = vunpack.c.l.b16 %v147
    %v437 = vunpack.c.h.b16 %v147
    %v438 = vunpack.c.l.b16 %v148
    %v439 = vunpack.c.h.b16 %v148
    %v440 = vunpack.c.l.b16 %v149
    %v441 = vunpack.c.h.b16 %v149
    %v442 = vunpack.c.l.b16 %v150
    %v443 = vunpack.c.h.b16 %v150
    %v444 = vunpack.c.l.b16 %v151
    %v445 = vunpack.c.h.b16 %v151
    %v446 = vunpack.c.l.b16 %v152
    %v447 = vunpack.c.h.b16 %v152
    %v448 = vunpack.c.l.b16 %v153
    %v449 = vunpack.c.h.b16 %v153
    %v450 = vunpack.c.l.b16 %v154
    %v451 = vunpack.c.h.b16 %v154
    %v452 = vunpack.c.l.b16 %v155
    %v453 = vunpack.c.h.b16 %v155
    %v454 = vunpack.c.l.b16 %v156
    %v455 = vunpack.c.h.b16 %v156
    %v456 = vunpack.c.l.b16 %v157
    %v457 = vunpack.c.h.b16 %v157
    %v458 = vunpack.c.l.b16 %v158
    %v459 = vunpack.c.h.b16 %v158
    %v460 = vunpack.c.l.b16 %v159
    %v461 = vunpack.c.h.b16 %v159
    %v462 = vunpack.c.l.b16 %v160
    %v463 = vunpack.c.h.b16 %v160
    %v464 = vunpack.c.l.b16 %v161
    %v465 = vunpack.c.h.b16 %v161
    %v466 = vunpack.c.l.b16 %v162
    %v467 = vunpack.c.h.b16 %v162
    %v468 = vunpack.c.l.b16 %v163
    %v469 = vunpack.c.h.b16 %v163
    %v470 = vunpack.c.l.b16 %v164
    %v471 = vunpack.c.h.b16 %v164
    %v472 = vunpack.c.l.b16 %v165
    %v473 = vunpack.c.h.b16 %v165
    %v474 = vunpack.c.l.b16 %v166
    %v475 = vunpack.c.h.b16 %v166
    %v476 = vunpack.c.l.b16 %v167
    %v477 = vunpack.c.h.b16 %v167
    %v478 = vunpack.c.l.b16 %v168
    %v479 = vunpack.c.h.b16 %v168
    %v480 = vunpack.c.l.b16 %v169
    %v481 = vunpack.c.h.b16 %v169
    %v482 = vunpack.c.l.b16 %v170
    %v483 = vunpack.c.h.b16 %v170
    %v484 = vunpack.c.l.b16 %v171
    %v485 = vunpack.c.h.b16 %v171
    %v486 = vunpack.c.l.b16 %v172
    %v487 = vunpack.c.h.b16 %v172
    %v488 = vunpack.c.l.b16 %v173
    %v489 = vunpack.c.h.b16 %v173
    %v490 = vunpack.c.l.b16 %v174
    %v491 = vunpack.c.h.b16 %v174
    %v492 = vunpack.c.l.b16 %v175
    %v493 = vunpack.c.h.b16 %v175
    %v494 = vunpack.c.l.b16 %v176
    %v495 = vunpack.c.h.b16 %v176
    %v496 = vunpack.c.l.b16 %v177
    %v497 = vunpack.c.h.b16 %v177
    %v498 = vunpack.c.l.b16 %v178
    %v499 = vunpack.c.h.b16 %v178
    %v500 = vunpack.c.l.b16 %v179
    %v501 = vunpack.c.h.b16 %v179
    %v502 = vunpack.c.l.b16 %v180
    %v503 = vunpack.c.h.b16 %v180
    %v504 = vunpack.c.l.b16 %v181
    %v505 = vunpack.c.h.b16 %v181
    %v506 = vunpack.c.l.b16 %v182
    %v507 = vunpack.c.h.b16 %v182
    %v508 = vunpack.c.l.b16 %v183
    %v509 = vunpack.c.h.b16 %v183
    %v510 = vunpack.c.l.b16 %v184
    %v511 = vunpack.c.h.b16 %v184
    %v512 = vunpack.c.l.b16 %v185
    %v513 = vunpack.c.h.b16 %v185
    %v514 = vunpack.c.l.b16 %v186
    %v515 = vunpack.c.h.b16 %v186
    %v516 = vunpack.c.l.b16 %v187
    %v517 = vunpack.c.h.b16 %v187
    %v518 = vunpack.c.l.b16 %v188
    %v519 = vunpack.c.h.b16 %v188
    %v520 = vunpack.c.l.b16 %v189
    %v521 = vunpack.c.h.b16 %v189
    %v522 = vunpack.c.l.b16 %v190
    %v523 = vunpack.c.h.b16 %v190
    %v524 = vunpack.c.l.b16 %v191
    %v525 = vunpack.c.h.b16 %v191
    %v526 = vunpack.c.l.b16 %v192
    %v527 = vunpack.c.h.b16 %v192
    %v528 = vunpack.c.l.b16 %v193
    %v529 = vunpack.c.h.b16 %v193
    %v530 = vunpack.c.l.b16 %v194
    %v531 = vunpack.c.h.b16 %v194
    %v532 = vunpack.c.l.b16 %v195
    %v533 = vunpack.c.h.b16 %v195
    %v534 = vunpack.c.l.b16 %v196
    %v535 = vunpack.c.h.b16 %v196
    %v536 = vunpack.c.l.b16 %v197
    %v537 = vunpack.c.h.b16 %v197
    %v538 = vunpack.c.l.b16 %v198
    %v539 = vunpack.c.h.b16 %v198
    %v540 = vunpack.c.l.b16 %v199
    %v541 = vunpack.c.h.b16 %v199
    %v542 = vunpack.c.l.b16 %v200
    %v543 = vunpack.c.h.b16 %v200
    %v544 = vunpack.c.l.b16 %v201
    %v545 = vunpack.c.h.b16 %v201
    %v546 = vunpack.c.l.b16 %v202
    %v547 = vunpack.c.h.b16 %v202
    %v548 = vunpack.c.l.b16 %v203
    %v549 = vunpack.c.h.b16 %v203
    %v550 = vunpack.c.l.b16 %v204
    %v551 = vunpack.c.h.b16 %v204
    %v552 = vunpack.c.l.b16 %v205
    %v553 = vunpack.c.h.b16 %v205
    %v554 = vunpack.c.l.b16 %v206
    %v555 = vunpack.c.h.b16 %v206
    %v556 = vunpack.c.l.b16 %v207
    %v557 = vunpack.c.h.b16 %v207
    %v558 = vunpack.c.l.b16 %v208
    %v559 = vunpack.c.h.b16 %v208
    %v560 = vunpack.c.l.b16 %v209
    %v561 = vunpack.c.h.b16 %v209
    %v562 = vunpack.c.l.b16 %v210
    %v563 = vunpack.c.h.b16 %v210
    %v564 = vunpack.c.l.b16 %v211
    %v565 = vunpack.c.h.b16 %v211
    %v566 = vunpack.c.l.b16 %v212
    %v567 = vunpack.c.h.b16 %v212
    %v568 = vunpack.c.l.b16 %v213
    %v569 = vunpack.c.h.b16 %v213
    %v570 = vunpack.c.l.b16 %v214
    %v571 = vunpack.c.h.b16 %v214
    %v572 = vunpack.c.l.b16 %v215
    %v573 = vunpack.c.h.b16 %v215
    %v574 = vunpack.c.l.b16 %v216
    %v575 = vunpack.c.h.b16 %v216
    %v576 = vunpack.c.l.b16 %v217
    %v577 = vunpack.c.h.b16 %v217
    %v578 = vunpack.c.l.b16 %v218
    %v579 = vunpack.c.h.b16 %v218
    %v580 = vunpack.c.l.b16 %v219
    %v581 = vunpack.c.h.b16 %v219
    %v582 = vunpack.c.l.b16 %v220
    %v583 = vunpack.c.h.b16 %v220
    %v584 = vunpack.c.l.b16 %v221
    %v585 = vunpack.c.h.b16 %v221
    %v586 = vunpack.c.l.b16 %v222
    %v587 = vunpack.c.h.b16 %v222
    %v588 = vunpack.c.l.b16 %v223
    %v589 = vunpack.c.h.b16 %v223
    %v590 = vunpack.c.l.b16 %v224
    %v591 = vunpack.c.h.b16 %v224
    %v592 = vunpack.c.l.b16 %v225
    %v593 = vunpack.c.h.b16 %v225
    %v594 = vunpack.c.l.b16 %v226
    %v595 = vunpack.c.h.b16 %v226
    %v596 = vunpack.c.l.b16 %v227
    %v597 = vunpack.c.h.b16 %v227
    %v598 = vunpack.c.l.b16 %v228
    %v599 = vunpack.c.h.b16 %v228
    %v600 = vunpack.c.l.b16 %v229
    %v601 = vunpack.c.h.b16 %v229
    %v602 = vunpack.c.l.b16 %v230
    %v603 = vunpack.c.h.b16 %v230
    %v604 = vunpack.c.l.b16 %v231
    %v605 = vunpack.c.h.b16 %v231
    %v606 = vunpack.c.l.b16 %v232
    %v607 = vunpack.c.h.b16 %v232
    %v608 = vunpack.c.l.b16 %v233
    %v609 = vunpack.c.h.b16 %v233
    %v610 = vunpack.c.l.b16 %v234
    %v611 = vunpack.c.h.b16 %v234
    %v612 = vunpack.c.l.b16 %v235
    %v613 = vunpack.c.h.b16 %v235
    %v614 = vunpack.c.l.b16 %v236
    %v615 = vunpack.c.h.b16 %v236
    %v616 = vunpack.c.l.b16 %v237
    %v617 = vunpack.c.h.b16 %v237
    %v618 = vunpack.c.l.b16 %v238
    %v619 = vunpack.c.h.b16 %v238
    %v620 = vunpack.c.l.b16 %v239
    %v621 = vunpack.c.h.b16 %v239
    %v622 = vunpack.c.l.b16 %v240
    %v623 = vunpack.c.h.b16 %v240
    %v624 = vunpack.c.l.b16 %v241
    %v625 = vunpack.c.h.b16 %v241
    %v626 = vunpack.c.l.b16 %v242
    %v627 = vunpack.c.h.b16 %v242
    %v628 = vunpack.c.l.b16 %v243
    %v629 = vunpack.c.h.b16 %v243
    %v630 = vunpack.c.l.b16 %v244
    %v631 = vunpack.c.h.b16 %v244
    %v632 = vunpack.c.l.b16 %v245
    %v633 = vunpack.c.h.b16 %v245
    %v634 = vunpack.c.l.b16 %v246
    %v635 = vunpack.c.h.b16 %v246
    %v636 = vunpack.c.l.b16 %v247
    %v637 = vunpack.c.h.b16 %v247
    %v638 = vunpack.c.l.b16 %v248
    %v639 = vunpack.c.h.b16 %v248
    %v640 = vunpack.c.l.b16 %v249
    %v641 = vunpack.c.h.b16 %v249
    %v642 = vunpack.c.l.b16 %v250
    %v643 = vunpack.c.h.b16 %v250
    %v644 = vunpack.c.l.b16 %v251
    %v645 = vunpack.c.h.b16 %v251
    %v646 = vunpack.c.l.b16 %v252
    %v647 = vunpack.c.h.b16 %v252
    %v648 = vunpack.c.l.b16 %v253
    %v649 = vunpack.c.h.b16 %v253
    %v650 = vunpack.c.l.b16 %v254
    %v651 = vunpack.c.h.b16 %v254
    %v652 = vunpack.c.l.b16 %v255
    %v653 = vunpack.c.h.b16 %v255
    %v654 = vunpack.c.l.b16 %v256
    %v655 = vunpack.c.h.b16 %v256
    %v656 = vunpack.c.l.b16 %v257
    %v657 = vunpack.c.h.b16 %v257
    %v658 = vunpack.c.l.b16 %v258
    %v659 = vunpack.c.h.b16 %v258
    %v660 = vunpack.c.l.b16 %v259
    %v661 = vunpack.c.h.b16 %v259
    %v662 = vunpack.c.l.b16 %v260
    %v663 = vunpack.c.h.b16 %v260
    %v664 = vunpack.c.l.b16 %v261
    %v665 = vunpack.c.h.b16 %v261
    %v666 = vunpack.c.l.b16 %v262
    %v667 = vunpack.c.h.b16 %v262
    %v668 = vunpack.c.l.b16 %v263
    %v669 = vunpack.c.h.b16 %v263
    %v670 = vunpack.c.l.b16 %v264
    %v671 = vunpack.c.h.b16 %v264
    %v672 = vunpack.c.l.b16 %v265
    %v673 = vunpack.c.h.b16 %v265
    %v674 = vunpack.c.l.b16 %v266
    %v675 = vunpack.c.h.b16 %v266
    %v676 = vunpack.c.l.b16 %v267
    %v677 = vunpack.c.h.b16 %v267
    %v678 = vunpack.c.l.b16 %v268
    %v679 = vunpack.c.h.b16 %v268
    %v680 = vunpack.c.l.b16 %v269
    %v681 = vunpack.c.h.b16 %v269
    %v682 = vpack.c.b16 %v428, %v426
    %v683 = vpack.c.b16 %v429, %v427
    %v684 = vpack.c.b16 %v432, %v430
    %v685 = vpack.c.b16 %v433, %v431
    %v686 = vpack.c.b16 %v436, %v434
    %v687 = vpack.c.b16 %v437, %v435
    %v688 = vpack.c.b16 %v440, %v438
    %v689 = vpack.c.b16 %v441, %v439
    %v690 = vpack.c.b16 %v444, %v442
    %v691 = vpack.c.b16 %v445, %v443
    %v692 = vpack.c.b16 %v448, %v446
    %v693 = vpack.c.b16 %v449, %v447
    %v694 = vpack.c.b16 %v452, %v450
    %v695 = vpack.c.b16 %v453, %v451
    %v696 = vpack.c.b16 %v456, %v454
    %v697 = vpack.c.b16 %v457, %v455
    %v698 = vpack.c.b16 %v460, %v458
    %v699 = vpack.c.b16 %v461, %v459
    %v700 = vpack.c.b16 %v464, %v462
    %v701 = vpack.c.b16 %v465, %v463
    %v702 = vpack.c.b16 %v468, %v466
    %v703 = vpack.c.b16 %v469, %v467
    %v704 = vpack.c.b16 %v472, %v470
    %v705 = vpack.c.b16 %v473, %v471
    %v706 = vpack.c.b16 %v476, %v474
    %v707 = vpack.c.b16 %v477, %v475
    %v708 = vpack.c.b16 %v480, %v478
    %v709 = vpack.c.b16 %v481, %v479
    %v710 = vpack.c.b16 %v484, %v482
    %v711 = vpack.c.b16 %v485, %v483
    %v712 = vpack.c.b16 %v488, %v486
    %v713 = vpack.c.b16 %v489, %v487
    %v714 = vpack.c.b16 %v492, %v490
    %v715 = vpack.c.b16 %v493, %v491
    %v716 = vpack.c.b16 %v496, %v494
    %v717 = vpack.c.b16 %v497, %v495
    %v718 = vpack.c.b16 %v500, %v498
    %v719 = vpack.c.b16 %v501, %v499
    %v720 = vpack.c.b16 %v504, %v502
    %v721 = vpack.c.b16 %v505, %v503
    %v722 = vpack.c.b16 %v508, %v506
    %v723 = vpack.c.b16 %v509, %v507
    %v724 = vpack.c.b16 %v512, %v510
    %v725 = vpack.c.b16 %v513, %v511
    %v726 = vpack.c.b16 %v516, %v514
    %v727 = vpack.c.b16 %v517, %v515
    %v728 = vpack.c.b16 %v520, %v518
    %v729 = vpack.c.b16 %v521, %v519
    %v730 = vpack.c.b16 %v524, %v522
    %v731 = vpack.c.b16 %v525, %v523
    %v732 = vpack.c.b16 %v528, %v526
    %v733 = vpack.c.b16 %v529, %v527
    %v734 = vpack.c.b16 %v532, %v530
    %v735 = vpack.c.b16 %v533, %v531
    %v736 = vpack.c.b16 %v536, %v534
    %v737 = vpack.c.b16 %v537, %v535
    %v738 = vpack.c.b16 %v540, %v538
    %v739 = vpack.c.b16 %v541, %v539
    %v740 = vpack.c.b16 %v544, %v542
    %v741 = vpack.c.b16 %v545, %v543
    %v742 = vpack.c.b16 %v548, %v546
    %v743 = vpack.c.b16 %v549, %v547
    %v744 = vpack.c.b16 %v552, %v550
    %v745 = vpack.c.b16 %v553, %v551
    %v746 = vpack.c.b16 %v556, %v554
    %v747 = vpack.c.b16 %v557, %v555
    %v748 = vpack.c.b16 %v560, %v558
    %v749 = vpack.c.b16 %v561, %v559
    %v750 = vpack.c.b16 %v564, %v562
    %v751 = vpack.c.b16 %v565, %v563
    %v752 = vpack.c.b16 %v568, %v566
    %v753 = vpack.c.b16 %v569, %v567
    %v754 = vpack.c.b16 %v572, %v570
    %v755 = vpack.c.b16 %v573, %v571
    %v756 = vpack.c.b16 %v576, %v574
    %v757 = vpack.c.b16 %v577, %v575
    %v758 = vpack.c.b16 %v580, %v578
    %v759 = vpack.c.b16 %v581, %v579
    %v760 = vpack.c.b16 %v584, %v582
    %v761 = vpack.c.b16 %v585, %v583
    %v762 = vpack.c.b16 %v588, %v586
    %v763 = vpack.c.b16 %v589, %v587
    %v764 = vpack.c.b16 %v592, %v590
    %v765 = vpack.c.b16 %v593, %v591
    %v766 = vpack.c.b16 %v596, %v594
    %v767 = vpack.c.b16 %v597, %v595
    %v768 = vpack.c.b16 %v600, %v598
    %v769 = vpack.c.b16 %v601, %v599
    %v770 = vpack.c.b16 %v604, %v602
    %v771 = vpack.c.b16 %v605, %v603
    %v772 = vpack.c.b16 %v608, %v606
    %v773 = vpack.c.b16 %v609, %v607
    %v774 = vpack.c.b16 %v612, %v610
    %v775 = vpack.c.b16 %v613, %v611
    %v776 = vpack.c.b16 %v616, %v614
    %v777 = vpack.c.b16 %v617, %v615
    %v778 = vpack.c.b16 %v620, %v618
    %v779 = vpack.c.b16 %v621, %v619
    %v780 = vpack.c.b16 %v624, %v622
    %v781 = vpack.c.b16 %v625, %v623
    %v782 = vpack.c.b16 %v628, %v626
    %v783 = vpack.c.b16 %v629, %v627
    %v784 = vpack.c.b16 %v632, %v630
    %v785 = vpack.c.b16 %v633, %v631
    %v786 = vpack.c.b16 %v636, %v634
    %v787 = vpack.c.b16 %v637, %v635
    %v788 = vpack.c.b16 %v640, %v638
    %v789 = vpack.c.b16 %v641, %v639
    %v790 = vpack.c.b16 %v644, %v642
    %v791 = vpack.c.b16 %v645, %v643
    %v792 = vpack.c.b16 %v648, %v646
    %v793 = vpack.c.b16 %v649, %v647
    %v794 = vpack.c.b16 %v652, %v650
    %v795 = vpack.c.b16 %v653, %v651
    %v796 = vpack.c.b16 %v656, %v654
    %v797 = vpack.c.b16 %v657, %v655
    %v798 = vpack.c.b16 %v660, %v658
    %v799 = vpack.c.b16 %v661, %v659
    %v800 = vpack.c.b16 %v664, %v662
    %v801 = vpack.c.b16 %v665, %v663
    %v802 = vpack.c.b16 %v668, %v666
    %v803 = vpack.c.b16 %v669, %v667
    %v804 = vpack.c.b16 %v672, %v670
    %v805 = vpack.c.b16 %v673, %v671
    %v806 = vpack.c.b16 %v676, %v674
    %v807 = vpack.c.b16 %v677, %v675
    %v808 = vpack.c.b16 %v680, %v678
    %v809 = vpack.c.b16 %v681, %v679
    %938 = vmatprep.subr.bf16.mxu0 %v697
    %939 = vmatpush1.bf16.msra.mxu0 %v696
    %940 = vmatprep.subr.bf16.mxu0 %v695
    %941 = vmatpush1.bf16.msra.mxu0 %v694
    %942 = vmatprep.subr.bf16.mxu0 %v693
    %943 = vmatpush1.bf16.msra.mxu0 %v692
    %944 = vmatprep.subr.bf16.mxu0 %v691
    %945 = vmatpush1.bf16.msra.mxu0 %v690
    %946 = vmatprep.subr.bf16.mxu0 %v689
    %947 = vmatpush1.bf16.msra.mxu0 %v688
    %948 = vmatprep.subr.bf16.mxu0 %v687
    %949 = vmatpush1.bf16.msra.mxu0 %v686
    %950 = vmatprep.subr.bf16.mxu0 %v685
    %951 = vmatpush1.bf16.msra.mxu0 %v684
    %952 = vmatprep.subr.bf16.mxu0 %v683
    %953 = vmatpush1.bf16.msra.mxu0 %v682
    %954 = vmatprep.subr.bf16.mxu0 %v713
    %955 = vmatpush2.bf16.msra.mxu0 %v712
    %956 = vmatprep.subr.bf16.mxu0 %v711
    %957 = vmatpush2.bf16.msra.mxu0 %v710
    %958 = vmatprep.subr.bf16.mxu0 %v709
    %959 = vmatpush2.bf16.msra.mxu0 %v708
    %960 = vmatprep.subr.bf16.mxu0 %v707
    %961 = vmatpush2.bf16.msra.mxu0 %v706
    %962 = vmatprep.subr.bf16.mxu0 %v705
    %963 = vmatpush2.bf16.msra.mxu0 %v704
    %964 = vmatprep.subr.bf16.mxu0 %v703
    %965 = vmatpush2.bf16.msra.mxu0 %v702
    %966 = vmatprep.subr.bf16.mxu0 %v701
    %967 = vmatpush2.bf16.msra.mxu0 %v700
    %968 = vmatprep.subr.bf16.mxu0 %v699
    %969 = vmatpush2.bf16.msra.mxu0 %v698
    %970 = vmatprep.mubr.bf16.mxu0 %v283
    %971 = vmatmul.mubr.bf16.gmra.mxu0 %v282
    %v972 = vpop.f32.mrf.mxu0
    %v973 = vadd.f32 0.0, %v972
    %v974 = vpop.f32.mrf.mxu0
    %v975 = vadd.f32 0.0, %v974
    %v976 = vpop.f32.mrf.mxu0
    %v977 = vpop.f32.mrf.mxu0
    %978 = vdwg.mxu0
    %979 = vmatprep.subr.bf16.mxu0 %v729
    %980 = vmatpush1.bf16.msra.mxu0 %v728
    %981 = vmatprep.subr.bf16.mxu0 %v727
    %982 = vmatpush1.bf16.msra.mxu0 %v726
    %983 = vmatprep.subr.bf16.mxu0 %v725
    %984 = vmatpush1.bf16.msra.mxu0 %v724
    %985 = vmatprep.subr.bf16.mxu0 %v723
    %986 = vmatpush1.bf16.msra.mxu0 %v722
    %987 = vmatprep.subr.bf16.mxu0 %v721
    %988 = vmatpush1.bf16.msra.mxu0 %v720
    %989 = vmatprep.subr.bf16.mxu0 %v719
    %990 = vmatpush1.bf16.msra.mxu0 %v718
    %991 = vmatprep.subr.bf16.mxu0 %v717
    %992 = vmatpush1.bf16.msra.mxu0 %v716
    %993 = vmatprep.subr.bf16.mxu0 %v715
    %994 = vmatpush1.bf16.msra.mxu0 %v714
    %995 = vmatprep.subr.bf16.mxu0 %v745
    %996 = vmatpush2.bf16.msra.mxu0 %v744
    %997 = vmatprep.subr.bf16.mxu0 %v743
    %998 = vmatpush2.bf16.msra.mxu0 %v742
    %999 = vmatprep.subr.bf16.mxu0 %v741
    %1000 = vmatpush2.bf16.msra.mxu0 %v740
    %1001 = vmatprep.subr.bf16.mxu0 %v739
    %1002 = vmatpush2.bf16.msra.mxu0 %v738
    %1003 = vmatprep.subr.bf16.mxu0 %v737
    %1004 = vmatpush2.bf16.msra.mxu0 %v736
    %1005 = vmatprep.subr.bf16.mxu0 %v735
    %1006 = vmatpush2.bf16.msra.mxu0 %v734
    %1007 = vmatprep.subr.bf16.mxu0 %v733
    %1008 = vmatpush2.bf16.msra.mxu0 %v732
    %1009 = vmatprep.subr.bf16.mxu0 %v731
    %1010 = vmatpush2.bf16.msra.mxu0 %v730
    %1011 = vmatprep.mubr.bf16.mxu0 %v285
    %1012 = vmatmul.mubr.bf16.gmra.mxu0 %v284
    %v1013 = vpop.f32.mrf.mxu0
    %v1014 = vadd.f32 %v973, %v1013
    %v1015 = vpop.f32.mrf.mxu0
    %v1016 = vadd.f32 %v975, %v1015
    %v1017 = vpop.f32.mrf.mxu0
    %v1018 = vpop.f32.mrf.mxu0
    %1019 = vdwg.mxu0
    %1020 = vmatprep.subr.bf16.mxu0 %v761
    %1021 = vmatpush1.bf16.msra.mxu0 %v760
    %1022 = vmatprep.subr.bf16.mxu0 %v759
    %1023 = vmatpush1.bf16.msra.mxu0 %v758
    %1024 = vmatprep.subr.bf16.mxu0 %v757
    %1025 = vmatpush1.bf16.msra.mxu0 %v756
    %1026 = vmatprep.subr.bf16.mxu0 %v755
    %1027 = vmatpush1.bf16.msra.mxu0 %v754
    %1028 = vmatprep.subr.bf16.mxu0 %v753
    %1029 = vmatpush1.bf16.msra.mxu0 %v752
    %1030 = vmatprep.subr.bf16.mxu0 %v751
    %1031 = vmatpush1.bf16.msra.mxu0 %v750
    %1032 = vmatprep.subr.bf16.mxu0 %v749
    %1033 = vmatpush1.bf16.msra.mxu0 %v748
    %1034 = vmatprep.subr.bf16.mxu0 %v747
    %1035 = vmatpush1.bf16.msra.mxu0 %v746
    %1036 = vmatprep.subr.bf16.mxu0 %v777
    %1037 = vmatpush2.bf16.msra.mxu0 %v776
    %1038 = vmatprep.subr.bf16.mxu0 %v775
    %1039 = vmatpush2.bf16.msra.mxu0 %v774
    %1040 = vmatprep.subr.bf16.mxu0 %v773
    %1041 = vmatpush2.bf16.msra.mxu0 %v772
    %1042 = vmatprep.subr.bf16.mxu0 %v771
    %1043 = vmatpush2.bf16.msra.mxu0 %v770
    %1044 = vmatprep.subr.bf16.mxu0 %v769
    %1045 = vmatpush2.bf16.msra.mxu0 %v768
    %1046 = vmatprep.subr.bf16.mxu0 %v767
    %1047 = vmatpush2.bf16.msra.mxu0 %v766
    %1048 = vmatprep.subr.bf16.mxu0 %v765
    %1049 = vmatpush2.bf16.msra.mxu0 %v764
    %1050 = vmatprep.subr.bf16.mxu0 %v763
    %1051 = vmatpush2.bf16.msra.mxu0 %v762
    %1052 = vmatprep.mubr.bf16.mxu0 %v287
    %1053 = vmatmul.mubr.bf16.gmra.mxu0 %v286
    %v1054 = vpop.f32.mrf.mxu0
    %v1055 = vadd.f32 %v1014, %v1054
    %v1056 = vpop.f32.mrf.mxu0
    %v1057 = vadd.f32 %v1016, %v1056
    %v1058 = vpop.f32.mrf.mxu0
    %v1059 = vpop.f32.mrf.mxu0
    %1060 = vdwg.mxu0
    %1061 = vmatprep.subr.bf16.mxu0 %v793
    %1062 = vmatpush1.bf16.msra.mxu0 %v792
    %1063 = vmatprep.subr.bf16.mxu0 %v791
    %1064 = vmatpush1.bf16.msra.mxu0 %v790
    %1065 = vmatprep.subr.bf16.mxu0 %v789
    %1066 = vmatpush1.bf16.msra.mxu0 %v788
    %1067 = vmatprep.subr.bf16.mxu0 %v787
    %1068 = vmatpush1.bf16.msra.mxu0 %v786
    %1069 = vmatprep.subr.bf16.mxu0 %v785
    %1070 = vmatpush1.bf16.msra.mxu0 %v784
    %1071 = vmatprep.subr.bf16.mxu0 %v783
    %1072 = vmatpush1.bf16.msra.mxu0 %v782
    %1073 = vmatprep.subr.bf16.mxu0 %v781
    %1074 = vmatpush1.bf16.msra.mxu0 %v780
    %1075 = vmatprep.subr.bf16.mxu0 %v779
    %1076 = vmatpush1.bf16.msra.mxu0 %v778
    %1077 = vmatprep.subr.bf16.mxu0 %v809
    %1078 = vmatpush2.bf16.msra.mxu0 %v808
    %1079 = vmatprep.subr.bf16.mxu0 %v807
    %1080 = vmatpush2.bf16.msra.mxu0 %v806
    %1081 = vmatprep.subr.bf16.mxu0 %v805
    %1082 = vmatpush2.bf16.msra.mxu0 %v804
    %1083 = vmatprep.subr.bf16.mxu0 %v803
    %1084 = vmatpush2.bf16.msra.mxu0 %v802
    %1085 = vmatprep.subr.bf16.mxu0 %v801
    %1086 = vmatpush2.bf16.msra.mxu0 %v800
    %1087 = vmatprep.subr.bf16.mxu0 %v799
    %1088 = vmatpush2.bf16.msra.mxu0 %v798
    %1089 = vmatprep.subr.bf16.mxu0 %v797
    %1090 = vmatpush2.bf16.msra.mxu0 %v796
    %1091 = vmatprep.subr.bf16.mxu0 %v795
    %1092 = vmatpush2.bf16.msra.mxu0 %v794
    %1093 = vmatprep.mubr.bf16.mxu0 %v289
    %1094 = vmatmul.mubr.bf16.gmra.mxu0 %v288
    %v1095 = vpop.f32.mrf.mxu0
    %v1096 = vadd.f32 %v1055, %v1095
    %v1097 = vpop.f32.mrf.mxu0
    %v1098 = vadd.f32 %v1057, %v1097
    %v1099 = vpop.f32.mrf.mxu0
    %v1100 = vpop.f32.mrf.mxu0
    %1101 = vdwg.mxu0
    %v1102 = vld [vmem:[#allocation14] sm:$0x1]
    %v1104 = vlaneseq
    %v1105 = vshrl.u32 %v1104, 7
    %v1106 = vsub.s32 0, %v1105
    %v1107 = vrot.slane %v1102, %v1106
    %v1109 = vadd.f32 %v1096, %v1107
    %v1110 = vmax.f32 %v1109, 0.0
    %v1111 = vpack.c.bf16 %v1110, %v1110
    %v1112 = vld [vmem:[#allocation8] sm:$0xff]
    %v1113 = vld [vmem:[#allocation8 + $0x8] sm:$0xff]
    %v1114 = vld [vmem:[#allocation8 + $0x10] sm:$0xff]
    %v1115 = vld [vmem:[#allocation8 + $0x18] sm:$0xff]
    %v1116 = vld [vmem:[#allocation8 + $0x20] sm:$0xff]
    %v1117 = vld [vmem:[#allocation8 + $0x28] sm:$0xff]
    %v1118 = vld [vmem:[#allocation8 + $0x30] sm:$0xff]
    %v1119 = vld [vmem:[#allocation8 + $0x38] sm:$0xff]
    %v1120 = vld [vmem:[#allocation8 + $0x40] sm:$0xff]
    %v1121 = vld [vmem:[#allocation8 + $0x48] sm:$0xff]
    %v1122 = vld [vmem:[#allocation8 + $0x50] sm:$0xff]
    %v1123 = vld [vmem:[#allocation8 + $0x58] sm:$0xff]
    %v1124 = vld [vmem:[#allocation8 + $0x60] sm:$0xff]
    %v1125 = vld [vmem:[#allocation8 + $0x68] sm:$0xff]
    %v1126 = vld [vmem:[#allocation8 + $0x70] sm:$0xff]
    %v1127 = vld [vmem:[#allocation8 + $0x78] sm:$0xff]
    %v1128 = vld [vmem:[#allocation14 + $0x1] sm:$0x3]
    %v1130 = vlaneseq
    %v1131 = vshrl.u32 %v1130, 7
    %v1132 = vsub.s32 0, %v1131
    %v1133 = vrot.slane %v1128, %v1132
    %v1134 = vlaneseq
    %v1135 = vshrl.u32 %v1134, 7
    %v1136 = vsub.s32 1, %v1135
    %v1137 = vrot.slane %v1128, %v1136
    %v1156 = vunpack.c.l.b16 %v1112
    %v1157 = vunpack.c.h.b16 %v1112
    %v1158 = vunpack.c.l.b16 %v1113
    %v1159 = vunpack.c.h.b16 %v1113
    %v1160 = vunpack.c.l.b16 %v1114
    %v1161 = vunpack.c.h.b16 %v1114
    %v1162 = vunpack.c.l.b16 %v1115
    %v1163 = vunpack.c.h.b16 %v1115
    %v1164 = vunpack.c.l.b16 %v1116
    %v1165 = vunpack.c.h.b16 %v1116
    %v1166 = vunpack.c.l.b16 %v1117
    %v1167 = vunpack.c.h.b16 %v1117
    %v1168 = vunpack.c.l.b16 %v1118
    %v1169 = vunpack.c.h.b16 %v1118
    %v1170 = vunpack.c.l.b16 %v1119
    %v1171 = vunpack.c.h.b16 %v1119
    %v1172 = vunpack.c.l.b16 %v1120
    %v1173 = vunpack.c.h.b16 %v1120
    %v1174 = vunpack.c.l.b16 %v1121
    %v1175 = vunpack.c.h.b16 %v1121
    %v1176 = vunpack.c.l.b16 %v1122
    %v1177 = vunpack.c.h.b16 %v1122
    %v1178 = vunpack.c.l.b16 %v1123
    %v1179 = vunpack.c.h.b16 %v1123
    %v1180 = vunpack.c.l.b16 %v1124
    %v1181 = vunpack.c.h.b16 %v1124
    %v1182 = vunpack.c.l.b16 %v1125
    %v1183 = vunpack.c.h.b16 %v1125
    %v1184 = vunpack.c.l.b16 %v1126
    %v1185 = vunpack.c.h.b16 %v1126
    %v1186 = vunpack.c.l.b16 %v1127
    %v1187 = vunpack.c.h.b16 %v1127
    %v1188 = vpack.c.b16 %v1158, %v1156
    %v1189 = vpack.c.b16 %v1159, %v1157
    %v1190 = vpack.c.b16 %v1162, %v1160
    %v1191 = vpack.c.b16 %v1163, %v1161
    %v1192 = vpack.c.b16 %v1166, %v1164
    %v1193 = vpack.c.b16 %v1167, %v1165
    %v1194 = vpack.c.b16 %v1170, %v1168
    %v1195 = vpack.c.b16 %v1171, %v1169
    %v1196 = vpack.c.b16 %v1174, %v1172
    %v1197 = vpack.c.b16 %v1175, %v1173
    %v1198 = vpack.c.b16 %v1178, %v1176
    %v1199 = vpack.c.b16 %v1179, %v1177
    %v1200 = vpack.c.b16 %v1182, %v1180
    %v1201 = vpack.c.b16 %v1183, %v1181
    %v1202 = vpack.c.b16 %v1186, %v1184
    %v1203 = vpack.c.b16 %v1187, %v1185
    %1220 = vmatprep.subr.bf16.mxu0 %v1203
    %1221 = vmatpush1.bf16.msra.mxu0 %v1202
    %1222 = vmatprep.subr.bf16.mxu0 %v1201
    %1223 = vmatpush1.bf16.msra.mxu0 %v1200
    %1224 = vmatprep.subr.bf16.mxu0 %v1199
    %1225 = vmatpush1.bf16.msra.mxu0 %v1198
    %1226 = vmatprep.subr.bf16.mxu0 %v1197
    %1227 = vmatpush1.bf16.msra.mxu0 %v1196
    %1228 = vmatprep.subr.bf16.mxu0 %v1195
    %1229 = vmatpush1.bf16.msra.mxu0 %v1194
    %1230 = vmatprep.subr.bf16.mxu0 %v1193
    %1231 = vmatpush1.bf16.msra.mxu0 %v1192
    %1232 = vmatprep.subr.bf16.mxu0 %v1191
    %1233 = vmatpush1.bf16.msra.mxu0 %v1190
    %1234 = vmatprep.subr.bf16.mxu0 %v1189
    %1235 = vmatpush1.bf16.msra.mxu0 %v1188
    %1236 = vmatprep.subr.bf16.mxu0 0
    %1237 = vmatpush2.bf16.msra.mxu0 0
    %1238 = vmatprep.subr.bf16.mxu0 0
    %1239 = vmatpush2.bf16.msra.mxu0 0
    %1240 = vmatprep.subr.bf16.mxu0 0
    %1241 = vmatpush2.bf16.msra.mxu0 0
    %1242 = vmatprep.subr.bf16.mxu0 0
    %1243 = vmatpush2.bf16.msra.mxu0 0
    %1244 = vmatprep.subr.bf16.mxu0 0
    %1245 = vmatpush2.bf16.msra.mxu0 0
    %1246 = vmatprep.subr.bf16.mxu0 0
    %1247 = vmatpush2.bf16.msra.mxu0 0
    %1248 = vmatprep.subr.bf16.mxu0 0
    %1249 = vmatpush2.bf16.msra.mxu0 0
    %1250 = vmatprep.subr.bf16.mxu0 0
    %1251 = vmatpush2.bf16.msra.mxu0 0
    %1252 = vmatprep.mubr.bf16.mxu0 0
    %1253 = vmatmul.mubr.bf16.gmra.mxu0 %v1111
    %v1254 = vpop.f32.mrf.mxu0
    %v1255 = vadd.f32 %v1133, %v1254
    %v1256 = vpop.f32.mrf.mxu0
    %v1257 = vadd.f32 %v1137, %v1256
    %v1258 = vpop.f32.mrf.mxu0
    %v1259 = vpop.f32.mrf.mxu0
    %1260 = vdwg.mxu0
    %v1261 = vld [vmem:[#allocation5] sm:$0xff]
    %v1262 = vmul.f32 %v1257, 0.5
    %v1263 = vmul.f32 %v1262, 1.442695
    %v1264 = vpow.pop %v1263
    %v1265 = vmul.f32 %v1261, %v1264
    %v1266 = vadd.f32 %v1255, %v1265
    %v1267 = vpack.c.bf16 %v1266, %v1266
    %v1268 = vpack.c.bf16 %v1255, %v1255
    %v1269 = vld [vmem:[#allocation10] sm:$0xf]
    %v1270 = vld [vmem:[#allocation10 + $0x4] sm:$0xf]
    %v1271 = vld [vmem:[#allocation10 + $0x8] sm:$0xf]
    %v1272 = vld [vmem:[#allocation10 + $0xc] sm:$0xf]
    %v1273 = vld [vmem:[#allocation10 + $0x10] sm:$0xf]
    %v1274 = vld [vmem:[#allocation10 + $0x14] sm:$0xf]
    %v1275 = vld [vmem:[#allocation10 + $0x18] sm:$0xf]
    %v1276 = vld [vmem:[#allocation10 + $0x1c] sm:$0xf]
    %v1277 = vld [vmem:[#allocation10 + $0x20] sm:$0xf]
    %v1278 = vld [vmem:[#allocation10 + $0x24] sm:$0xf]
    %v1279 = vld [vmem:[#allocation10 + $0x28] sm:$0xf]
    %v1280 = vld [vmem:[#allocation10 + $0x2c] sm:$0xf]
    %v1281 = vld [vmem:[#allocation10 + $0x30] sm:$0xf]
    %v1282 = vld [vmem:[#allocation10 + $0x34] sm:$0xf]
    %v1283 = vld [vmem:[#allocation10 + $0x38] sm:$0xf]
    %v1284 = vld [vmem:[#allocation10 + $0x3c] sm:$0xf]
    %v1285 = vld [vmem:[#allocation14 + $0x3] sm:$0x1]
    %v1287 = vlaneseq
    %v1288 = vshrl.u32 %v1287, 7
    %v1289 = vsub.s32 0, %v1288
    %v1290 = vrot.slane %v1285, %v1289
    %v1308 = vunpack.c.l.b16 %v1269
    %v1309 = vunpack.c.l.b16 %v1270
    %v1310 = vunpack.c.l.b16 %v1271
    %v1311 = vunpack.c.l.b16 %v1272
    %v1312 = vunpack.c.l.b16 %v1273
    %v1313 = vunpack.c.l.b16 %v1274
    %v1314 = vunpack.c.l.b16 %v1275
    %v1315 = vunpack.c.l.b16 %v1276
    %v1316 = vunpack.c.l.b16 %v1277
    %v1317 = vunpack.c.l.b16 %v1278
    %v1318 = vunpack.c.l.b16 %v1279
    %v1319 = vunpack.c.l.b16 %v1280
    %v1320 = vunpack.c.l.b16 %v1281
    %v1321 = vunpack.c.l.b16 %v1282
    %v1322 = vunpack.c.l.b16 %v1283
    %v1323 = vunpack.c.l.b16 %v1284
    %v1324 = vpack.c.b16 %v1309, %v1308
    %v1325 = vpack.c.b16 %v1311, %v1310
    %v1326 = vpack.c.b16 %v1313, %v1312
    %v1327 = vpack.c.b16 %v1315, %v1314
    %v1328 = vpack.c.b16 %v1317, %v1316
    %v1329 = vpack.c.b16 %v1319, %v1318
    %v1330 = vpack.c.b16 %v1321, %v1320
    %v1331 = vpack.c.b16 %v1323, %v1322
    %1340 = vmatprep.subr.bf16.mxu0 0
    %1341 = vmatpush1.bf16.msra.mxu0 %v1331
    %1342 = vmatprep.subr.bf16.mxu0 0
    %1343 = vmatpush1.bf16.msra.mxu0 %v1330
    %1344 = vmatprep.subr.bf16.mxu0 0
    %1345 = vmatpush1.bf16.msra.mxu0 %v1329
    %1346 = vmatprep.subr.bf16.mxu0 0
    %1347 = vmatpush1.bf16.msra.mxu0 %v1328
    %1348 = vmatprep.subr.bf16.mxu0 0
    %1349 = vmatpush1.bf16.msra.mxu0 %v1327
    %1350 = vmatprep.subr.bf16.mxu0 0
    %1351 = vmatpush1.bf16.msra.mxu0 %v1326
    %1352 = vmatprep.subr.bf16.mxu0 0
    %1353 = vmatpush1.bf16.msra.mxu0 %v1325
    %1354 = vmatprep.subr.bf16.mxu0 0
    %1355 = vmatpush1.bf16.msra.mxu0 %v1324
    %1356 = vmatprep.subr.bf16.mxu0 0
    %1357 = vmatpush2.bf16.msra.mxu0 0
    %1358 = vmatprep.subr.bf16.mxu0 0
    %1359 = vmatpush2.bf16.msra.mxu0 0
    %1360 = vmatprep.subr.bf16.mxu0 0
    %1361 = vmatpush2.bf16.msra.mxu0 0
    %1362 = vmatprep.subr.bf16.mxu0 0
    %1363 = vmatpush2.bf16.msra.mxu0 0
    %1364 = vmatprep.subr.bf16.mxu0 0
    %1365 = vmatpush2.bf16.msra.mxu0 0
    %1366 = vmatprep.subr.bf16.mxu0 0
    %1367 = vmatpush2.bf16.msra.mxu0 0
    %1368 = vmatprep.subr.bf16.mxu0 0
    %1369 = vmatpush2.bf16.msra.mxu0 0
    %1370 = vmatprep.subr.bf16.mxu0 0
    %1371 = vmatpush2.bf16.msra.mxu0 0
    %1372 = vmatprep.mubr.bf16.mxu0 0
    %1373 = vmatmul.mubr.bf16.gmra.mxu0 %v1267
    %v1374 = vpop.f32.mrf.mxu0
    %v1375 = vadd.f32 %v1290, %v1374
    %v1376 = vpop.f32.mrf.mxu0
    %v1377 = vpop.f32.mrf.mxu0
    %v1378 = vpop.f32.mrf.mxu0
    %1379 = vdwg.mxu0
    %v1380 = vmax.f32 %v1375, 0.0
    %v1381 = vpack.c.bf16 %v1380, %v1380
    %v1382 = vld [vmem:[#allocation11] sm:$0xff]
    %v1383 = vld [vmem:[#allocation11 + $0x8] sm:$0xff]
    %v1384 = vld [vmem:[#allocation11 + $0x10] sm:$0xff]
    %v1385 = vld [vmem:[#allocation11 + $0x18] sm:$0xff]
    %v1386 = vld [vmem:[#allocation11 + $0x20] sm:$0xff]
    %v1387 = vld [vmem:[#allocation11 + $0x28] sm:$0xff]
    %v1388 = vld [vmem:[#allocation11 + $0x30] sm:$0xff]
    %v1389 = vld [vmem:[#allocation11 + $0x38] sm:$0xff]
    %v1390 = vld [vmem:[#allocation11 + $0x40] sm:$0xff]
    %v1391 = vld [vmem:[#allocation11 + $0x48] sm:$0xff]
    %v1392 = vld [vmem:[#allocation11 + $0x50] sm:$0xff]
    %v1393 = vld [vmem:[#allocation11 + $0x58] sm:$0xff]
    %v1394 = vld [vmem:[#allocation11 + $0x60] sm:$0xff]
    %v1395 = vld [vmem:[#allocation11 + $0x68] sm:$0xff]
    %v1396 = vld [vmem:[#allocation11 + $0x70] sm:$0xff]
    %v1397 = vld [vmem:[#allocation11 + $0x78] sm:$0xff]
    %v1398 = vld [vmem:[#allocation11 + $0x80] sm:$0xff]
    %v1399 = vld [vmem:[#allocation11 + $0x88] sm:$0xff]
    %v1400 = vld [vmem:[#allocation11 + $0x90] sm:$0xff]
    %v1401 = vld [vmem:[#allocation11 + $0x98] sm:$0xff]
    %v1402 = vld [vmem:[#allocation11 + $0xa0] sm:$0xff]
    %v1403 = vld [vmem:[#allocation11 + $0xa8] sm:$0xff]
    %v1404 = vld [vmem:[#allocation11 + $0xb0] sm:$0xff]
    %v1405 = vld [vmem:[#allocation11 + $0xb8] sm:$0xff]
    %v1406 = vld [vmem:[#allocation11 + $0xc0] sm:$0xff]
    %v1407 = vld [vmem:[#allocation11 + $0xc8] sm:$0xff]
    %v1408 = vld [vmem:[#allocation11 + $0xd0] sm:$0xff]
    %v1409 = vld [vmem:[#allocation11 + $0xd8] sm:$0xff]
    %v1410 = vld [vmem:[#allocation11 + $0xe0] sm:$0xff]
    %v1411 = vld [vmem:[#allocation11 + $0xe8] sm:$0xff]
    %v1412 = vld [vmem:[#allocation11 + $0xf0] sm:$0xff]
    %v1413 = vld [vmem:[#allocation11 + $0xf8] sm:$0xff]
    %v1414 = vld [vmem:[#allocation11 + $0x100] sm:$0xff]
    %v1415 = vld [vmem:[#allocation11 + $0x108] sm:$0xff]
    %v1416 = vld [vmem:[#allocation11 + $0x110] sm:$0xff]
    %v1417 = vld [vmem:[#allocation11 + $0x118] sm:$0xff]
    %v1418 = vld [vmem:[#allocation11 + $0x120] sm:$0xff]
    %v1419 = vld [vmem:[#allocation11 + $0x128] sm:$0xff]
    %v1420 = vld [vmem:[#allocation11 + $0x130] sm:$0xff]
    %v1421 = vld [vmem:[#allocation11 + $0x138] sm:$0xff]
    %v1422 = vld [vmem:[#allocation11 + $0x140] sm:$0xff]
    %v1423 = vld [vmem:[#allocation11 + $0x148] sm:$0xff]
    %v1424 = vld [vmem:[#allocation11 + $0x150] sm:$0xff]
    %v1425 = vld [vmem:[#allocation11 + $0x158] sm:$0xff]
    %v1426 = vld [vmem:[#allocation11 + $0x160] sm:$0xff]
    %v1427 = vld [vmem:[#allocation11 + $0x168] sm:$0xff]
    %v1428 = vld [vmem:[#allocation11 + $0x170] sm:$0xff]
    %v1429 = vld [vmem:[#allocation11 + $0x178] sm:$0xff]
    %v1430 = vld [vmem:[#allocation11 + $0x180] sm:$0xff]
    %v1431 = vld [vmem:[#allocation11 + $0x188] sm:$0xff]
    %v1432 = vld [vmem:[#allocation11 + $0x190] sm:$0xff]
    %v1433 = vld [vmem:[#allocation11 + $0x198] sm:$0xff]
    %v1434 = vld [vmem:[#allocation11 + $0x1a0] sm:$0xff]
    %v1435 = vld [vmem:[#allocation11 + $0x1a8] sm:$0xff]
    %v1436 = vld [vmem:[#allocation11 + $0x1b0] sm:$0xff]
    %v1437 = vld [vmem:[#allocation11 + $0x1b8] sm:$0xff]
    %v1438 = vld [vmem:[#allocation11 + $0x1c0] sm:$0xff]
    %v1439 = vld [vmem:[#allocation11 + $0x1c8] sm:$0xff]
    %v1440 = vld [vmem:[#allocation11 + $0x1d0] sm:$0xff]
    %v1441 = vld [vmem:[#allocation11 + $0x1d8] sm:$0xff]
    %v1442 = vld [vmem:[#allocation11 + $0x1e0] sm:$0xff]
    %v1443 = vld [vmem:[#allocation11 + $0x1e8] sm:$0xff]
    %v1444 = vld [vmem:[#allocation11 + $0x1f0] sm:$0xff]
    %v1445 = vld [vmem:[#allocation11 + $0x1f8] sm:$0xff]
    %v1446 = vld [vmem:[#allocation14 + $0x4] sm:$0xff]
    %v1448 = vlaneseq
    %v1449 = vshrl.u32 %v1448, 7
    %v1450 = vsub.s32 0, %v1449
    %v1451 = vrot.slane %v1446, %v1450
    %v1452 = vlaneseq
    %v1453 = vshrl.u32 %v1452, 7
    %v1454 = vsub.s32 1, %v1453
    %v1455 = vrot.slane %v1446, %v1454
    %v1456 = vlaneseq
    %v1457 = vshrl.u32 %v1456, 7
    %v1458 = vsub.s32 2, %v1457
    %v1459 = vrot.slane %v1446, %v1458
    %v1460 = vlaneseq
    %v1461 = vshrl.u32 %v1460, 7
    %v1462 = vsub.s32 3, %v1461
    %v1463 = vrot.slane %v1446, %v1462
    %v1464 = vlaneseq
    %v1465 = vshrl.u32 %v1464, 7
    %v1466 = vsub.s32 4, %v1465
    %v1467 = vrot.slane %v1446, %v1466
    %v1468 = vlaneseq
    %v1469 = vshrl.u32 %v1468, 7
    %v1470 = vsub.s32 5, %v1469
    %v1471 = vrot.slane %v1446, %v1470
    %v1472 = vlaneseq
    %v1473 = vshrl.u32 %v1472, 7
    %v1474 = vsub.s32 6, %v1473
    %v1475 = vrot.slane %v1446, %v1474
    %v1476 = vlaneseq
    %v1477 = vshrl.u32 %v1476, 7
    %v1478 = vsub.s32 7, %v1477
    %v1479 = vrot.slane %v1446, %v1478
    %v1552 = vunpack.c.l.b16 %v1382
    %v1553 = vunpack.c.h.b16 %v1382
    %v1554 = vunpack.c.l.b16 %v1383
    %v1555 = vunpack.c.h.b16 %v1383
    %v1556 = vunpack.c.l.b16 %v1384
    %v1557 = vunpack.c.h.b16 %v1384
    %v1558 = vunpack.c.l.b16 %v1385
    %v1559 = vunpack.c.h.b16 %v1385
    %v1560 = vunpack.c.l.b16 %v1386
    %v1561 = vunpack.c.h.b16 %v1386
    %v1562 = vunpack.c.l.b16 %v1387
    %v1563 = vunpack.c.h.b16 %v1387
    %v1564 = vunpack.c.l.b16 %v1388
    %v1565 = vunpack.c.h.b16 %v1388
    %v1566 = vunpack.c.l.b16 %v1389
    %v1567 = vunpack.c.h.b16 %v1389
    %v1568 = vunpack.c.l.b16 %v1390
    %v1569 = vunpack.c.h.b16 %v1390
    %v1570 = vunpack.c.l.b16 %v1391
    %v1571 = vunpack.c.h.b16 %v1391
    %v1572 = vunpack.c.l.b16 %v1392
    %v1573 = vunpack.c.h.b16 %v1392
    %v1574 = vunpack.c.l.b16 %v1393
    %v1575 = vunpack.c.h.b16 %v1393
    %v1576 = vunpack.c.l.b16 %v1394
    %v1577 = vunpack.c.h.b16 %v1394
    %v1578 = vunpack.c.l.b16 %v1395
    %v1579 = vunpack.c.h.b16 %v1395
    %v1580 = vunpack.c.l.b16 %v1396
    %v1581 = vunpack.c.h.b16 %v1396
    %v1582 = vunpack.c.l.b16 %v1397
    %v1583 = vunpack.c.h.b16 %v1397
    %v1584 = vunpack.c.l.b16 %v1398
    %v1585 = vunpack.c.h.b16 %v1398
    %v1586 = vunpack.c.l.b16 %v1399
    %v1587 = vunpack.c.h.b16 %v1399
    %v1588 = vunpack.c.l.b16 %v1400
    %v1589 = vunpack.c.h.b16 %v1400
    %v1590 = vunpack.c.l.b16 %v1401
    %v1591 = vunpack.c.h.b16 %v1401
    %v1592 = vunpack.c.l.b16 %v1402
    %v1593 = vunpack.c.h.b16 %v1402
    %v1594 = vunpack.c.l.b16 %v1403
    %v1595 = vunpack.c.h.b16 %v1403
    %v1596 = vunpack.c.l.b16 %v1404
    %v1597 = vunpack.c.h.b16 %v1404
    %v1598 = vunpack.c.l.b16 %v1405
    %v1599 = vunpack.c.h.b16 %v1405
    %v1600 = vunpack.c.l.b16 %v1406
    %v1601 = vunpack.c.h.b16 %v1406
    %v1602 = vunpack.c.l.b16 %v1407
    %v1603 = vunpack.c.h.b16 %v1407
    %v1604 = vunpack.c.l.b16 %v1408
    %v1605 = vunpack.c.h.b16 %v1408
    %v1606 = vunpack.c.l.b16 %v1409
    %v1607 = vunpack.c.h.b16 %v1409
    %v1608 = vunpack.c.l.b16 %v1410
    %v1609 = vunpack.c.h.b16 %v1410
    %v1610 = vunpack.c.l.b16 %v1411
    %v1611 = vunpack.c.h.b16 %v1411
    %v1612 = vunpack.c.l.b16 %v1412
    %v1613 = vunpack.c.h.b16 %v1412
    %v1614 = vunpack.c.l.b16 %v1413
    %v1615 = vunpack.c.h.b16 %v1413
    %v1616 = vunpack.c.l.b16 %v1414
    %v1617 = vunpack.c.h.b16 %v1414
    %v1618 = vunpack.c.l.b16 %v1415
    %v1619 = vunpack.c.h.b16 %v1415
    %v1620 = vunpack.c.l.b16 %v1416
    %v1621 = vunpack.c.h.b16 %v1416
    %v1622 = vunpack.c.l.b16 %v1417
    %v1623 = vunpack.c.h.b16 %v1417
    %v1624 = vunpack.c.l.b16 %v1418
    %v1625 = vunpack.c.h.b16 %v1418
    %v1626 = vunpack.c.l.b16 %v1419
    %v1627 = vunpack.c.h.b16 %v1419
    %v1628 = vunpack.c.l.b16 %v1420
    %v1629 = vunpack.c.h.b16 %v1420
    %v1630 = vunpack.c.l.b16 %v1421
    %v1631 = vunpack.c.h.b16 %v1421
    %v1632 = vunpack.c.l.b16 %v1422
    %v1633 = vunpack.c.h.b16 %v1422
    %v1634 = vunpack.c.l.b16 %v1423
    %v1635 = vunpack.c.h.b16 %v1423
    %v1636 = vunpack.c.l.b16 %v1424
    %v1637 = vunpack.c.h.b16 %v1424
    %v1638 = vunpack.c.l.b16 %v1425
    %v1639 = vunpack.c.h.b16 %v1425
    %v1640 = vunpack.c.l.b16 %v1426
    %v1641 = vunpack.c.h.b16 %v1426
    %v1642 = vunpack.c.l.b16 %v1427
    %v1643 = vunpack.c.h.b16 %v1427
    %v1644 = vunpack.c.l.b16 %v1428
    %v1645 = vunpack.c.h.b16 %v1428
    %v1646 = vunpack.c.l.b16 %v1429
    %v1647 = vunpack.c.h.b16 %v1429
    %v1648 = vunpack.c.l.b16 %v1430
    %v1649 = vunpack.c.h.b16 %v1430
    %v1650 = vunpack.c.l.b16 %v1431
    %v1651 = vunpack.c.h.b16 %v1431
    %v1652 = vunpack.c.l.b16 %v1432
    %v1653 = vunpack.c.h.b16 %v1432
    %v1654 = vunpack.c.l.b16 %v1433
    %v1655 = vunpack.c.h.b16 %v1433
    %v1656 = vunpack.c.l.b16 %v1434
    %v1657 = vunpack.c.h.b16 %v1434
    %v1658 = vunpack.c.l.b16 %v1435
    %v1659 = vunpack.c.h.b16 %v1435
    %v1660 = vunpack.c.l.b16 %v1436
    %v1661 = vunpack.c.h.b16 %v1436
    %v1662 = vunpack.c.l.b16 %v1437
    %v1663 = vunpack.c.h.b16 %v1437
    %v1664 = vunpack.c.l.b16 %v1438
    %v1665 = vunpack.c.h.b16 %v1438
    %v1666 = vunpack.c.l.b16 %v1439
    %v1667 = vunpack.c.h.b16 %v1439
    %v1668 = vunpack.c.l.b16 %v1440
    %v1669 = vunpack.c.h.b16 %v1440
    %v1670 = vunpack.c.l.b16 %v1441
    %v1671 = vunpack.c.h.b16 %v1441
    %v1672 = vunpack.c.l.b16 %v1442
    %v1673 = vunpack.c.h.b16 %v1442
    %v1674 = vunpack.c.l.b16 %v1443
    %v1675 = vunpack.c.h.b16 %v1443
    %v1676 = vunpack.c.l.b16 %v1444
    %v1677 = vunpack.c.h.b16 %v1444
    %v1678 = vunpack.c.l.b16 %v1445
    %v1679 = vunpack.c.h.b16 %v1445
    %v1680 = vpack.c.b16 %v1560, %v1552
    %v1681 = vpack.c.b16 %v1561, %v1553
    %v1682 = vpack.c.b16 %v1562, %v1554
    %v1683 = vpack.c.b16 %v1563, %v1555
    %v1684 = vpack.c.b16 %v1564, %v1556
    %v1685 = vpack.c.b16 %v1565, %v1557
    %v1686 = vpack.c.b16 %v1566, %v1558
    %v1687 = vpack.c.b16 %v1567, %v1559
    %v1688 = vpack.c.b16 %v1576, %v1568
    %v1689 = vpack.c.b16 %v1577, %v1569
    %v1690 = vpack.c.b16 %v1578, %v1570
    %v1691 = vpack.c.b16 %v1579, %v1571
    %v1692 = vpack.c.b16 %v1580, %v1572
    %v1693 = vpack.c.b16 %v1581, %v1573
    %v1694 = vpack.c.b16 %v1582, %v1574
    %v1695 = vpack.c.b16 %v1583, %v1575
    %v1696 = vpack.c.b16 %v1592, %v1584
    %v1697 = vpack.c.b16 %v1593, %v1585
    %v1698 = vpack.c.b16 %v1594, %v1586
    %v1699 = vpack.c.b16 %v1595, %v1587
    %v1700 = vpack.c.b16 %v1596, %v1588
    %v1701 = vpack.c.b16 %v1597, %v1589
    %v1702 = vpack.c.b16 %v1598, %v1590
    %v1703 = vpack.c.b16 %v1599, %v1591
    %v1704 = vpack.c.b16 %v1608, %v1600
    %v1705 = vpack.c.b16 %v1609, %v1601
    %v1706 = vpack.c.b16 %v1610, %v1602
    %v1707 = vpack.c.b16 %v1611, %v1603
    %v1708 = vpack.c.b16 %v1612, %v1604
    %v1709 = vpack.c.b16 %v1613, %v1605
    %v1710 = vpack.c.b16 %v1614, %v1606
    %v1711 = vpack.c.b16 %v1615, %v1607
    %v1712 = vpack.c.b16 %v1624, %v1616
    %v1713 = vpack.c.b16 %v1625, %v1617
    %v1714 = vpack.c.b16 %v1626, %v1618
    %v1715 = vpack.c.b16 %v1627, %v1619
    %v1716 = vpack.c.b16 %v1628, %v1620
    %v1717 = vpack.c.b16 %v1629, %v1621
    %v1718 = vpack.c.b16 %v1630, %v1622
    %v1719 = vpack.c.b16 %v1631, %v1623
    %v1720 = vpack.c.b16 %v1640, %v1632
    %v1721 = vpack.c.b16 %v1641, %v1633
    %v1722 = vpack.c.b16 %v1642, %v1634
    %v1723 = vpack.c.b16 %v1643, %v1635
    %v1724 = vpack.c.b16 %v1644, %v1636
    %v1725 = vpack.c.b16 %v1645, %v1637
    %v1726 = vpack.c.b16 %v1646, %v1638
    %v1727 = vpack.c.b16 %v1647, %v1639
    %v1728 = vpack.c.b16 %v1656, %v1648
    %v1729 = vpack.c.b16 %v1657, %v1649
    %v1730 = vpack.c.b16 %v1658, %v1650
    %v1731 = vpack.c.b16 %v1659, %v1651
    %v1732 = vpack.c.b16 %v1660, %v1652
    %v1733 = vpack.c.b16 %v1661, %v1653
    %v1734 = vpack.c.b16 %v1662, %v1654
    %v1735 = vpack.c.b16 %v1663, %v1655
    %v1736 = vpack.c.b16 %v1672, %v1664
    %v1737 = vpack.c.b16 %v1673, %v1665
    %v1738 = vpack.c.b16 %v1674, %v1666
    %v1739 = vpack.c.b16 %v1675, %v1667
    %v1740 = vpack.c.b16 %v1676, %v1668
    %v1741 = vpack.c.b16 %v1677, %v1669
    %v1742 = vpack.c.b16 %v1678, %v1670
    %v1743 = vpack.c.b16 %v1679, %v1671
    %1808 = vmatprep.subr.bf16.mxu0 %v1737
    %1809 = vmatpush1.bf16.msra.mxu0 %v1736
    %1810 = vmatprep.subr.bf16.mxu0 %v1729
    %1811 = vmatpush1.bf16.msra.mxu0 %v1728
    %1812 = vmatprep.subr.bf16.mxu0 %v1721
    %1813 = vmatpush1.bf16.msra.mxu0 %v1720
    %1814 = vmatprep.subr.bf16.mxu0 %v1713
    %1815 = vmatpush1.bf16.msra.mxu0 %v1712
    %1816 = vmatprep.subr.bf16.mxu0 %v1705
    %1817 = vmatpush1.bf16.msra.mxu0 %v1704
    %1818 = vmatprep.subr.bf16.mxu0 %v1697
    %1819 = vmatpush1.bf16.msra.mxu0 %v1696
    %1820 = vmatprep.subr.bf16.mxu0 %v1689
    %1821 = vmatpush1.bf16.msra.mxu0 %v1688
    %1822 = vmatprep.subr.bf16.mxu0 %v1681
    %1823 = vmatpush1.bf16.msra.mxu0 %v1680
    %1824 = vmatprep.subr.bf16.mxu0 0
    %1825 = vmatpush2.bf16.msra.mxu0 0
    %1826 = vmatprep.subr.bf16.mxu0 0
    %1827 = vmatpush2.bf16.msra.mxu0 0
    %1828 = vmatprep.subr.bf16.mxu0 0
    %1829 = vmatpush2.bf16.msra.mxu0 0
    %1830 = vmatprep.subr.bf16.mxu0 0
    %1831 = vmatpush2.bf16.msra.mxu0 0
    %1832 = vmatprep.subr.bf16.mxu0 0
    %1833 = vmatpush2.bf16.msra.mxu0 0
    %1834 = vmatprep.subr.bf16.mxu0 0
    %1835 = vmatpush2.bf16.msra.mxu0 0
    %1836 = vmatprep.subr.bf16.mxu0 0
    %1837 = vmatpush2.bf16.msra.mxu0 0
    %1838 = vmatprep.subr.bf16.mxu0 0
    %1839 = vmatpush2.bf16.msra.mxu0 0
    %1840 = vmatprep.mubr.bf16.mxu0 0
    %1841 = vmatmul.mubr.bf16.gmra.mxu0 %v1381
    %v1842 = vpop.f32.mrf.mxu0
    %v1843 = vadd.f32 %v1451, %v1842
    %v1844 = vpop.f32.mrf.mxu0
    %v1845 = vadd.f32 %v1455, %v1844
    %v1846 = vpop.f32.mrf.mxu0
    %v1847 = vpop.f32.mrf.mxu0
    %1848 = vdwg.mxu0
    %1849 = vmatprep.subr.bf16.mxu0 %v1739
    %1850 = vmatpush1.bf16.msra.mxu0 %v1738
    %1851 = vmatprep.subr.bf16.mxu0 %v1731
    %1852 = vmatpush1.bf16.msra.mxu0 %v1730
    %1853 = vmatprep.subr.bf16.mxu0 %v1723
    %1854 = vmatpush1.bf16.msra.mxu0 %v1722
    %1855 = vmatprep.subr.bf16.mxu0 %v1715
    %1856 = vmatpush1.bf16.msra.mxu0 %v1714
    %1857 = vmatprep.subr.bf16.mxu0 %v1707
    %1858 = vmatpush1.bf16.msra.mxu0 %v1706
    %1859 = vmatprep.subr.bf16.mxu0 %v1699
    %1860 = vmatpush1.bf16.msra.mxu0 %v1698
    %1861 = vmatprep.subr.bf16.mxu0 %v1691
    %1862 = vmatpush1.bf16.msra.mxu0 %v1690
    %1863 = vmatprep.subr.bf16.mxu0 %v1683
    %1864 = vmatpush1.bf16.msra.mxu0 %v1682
    %1865 = vmatprep.subr.bf16.mxu0 0
    %1866 = vmatpush2.bf16.msra.mxu0 0
    %1867 = vmatprep.subr.bf16.mxu0 0
    %1868 = vmatpush2.bf16.msra.mxu0 0
    %1869 = vmatprep.subr.bf16.mxu0 0
    %1870 = vmatpush2.bf16.msra.mxu0 0
    %1871 = vmatprep.subr.bf16.mxu0 0
    %1872 = vmatpush2.bf16.msra.mxu0 0
    %1873 = vmatprep.subr.bf16.mxu0 0
    %1874 = vmatpush2.bf16.msra.mxu0 0
    %1875 = vmatprep.subr.bf16.mxu0 0
    %1876 = vmatpush2.bf16.msra.mxu0 0
    %1877 = vmatprep.subr.bf16.mxu0 0
    %1878 = vmatpush2.bf16.msra.mxu0 0
    %1879 = vmatprep.subr.bf16.mxu0 0
    %1880 = vmatpush2.bf16.msra.mxu0 0
    %1881 = vmatprep.mubr.bf16.mxu0 0
    %1882 = vmatmul.mubr.bf16.gmra.mxu0 %v1381
    %v1883 = vpop.f32.mrf.mxu0
    %v1884 = vadd.f32 %v1459, %v1883
    %v1885 = vpop.f32.mrf.mxu0
    %v1886 = vadd.f32 %v1463, %v1885
    %v1887 = vpop.f32.mrf.mxu0
    %v1888 = vpop.f32.mrf.mxu0
    %1889 = vdwg.mxu0
    %1890 = vmatprep.subr.bf16.mxu0 %v1741
    %1891 = vmatpush1.bf16.msra.mxu0 %v1740
    %1892 = vmatprep.subr.bf16.mxu0 %v1733
    %1893 = vmatpush1.bf16.msra.mxu0 %v1732
    %1894 = vmatprep.subr.bf16.mxu0 %v1725
    %1895 = vmatpush1.bf16.msra.mxu0 %v1724
    %1896 = vmatprep.subr.bf16.mxu0 %v1717
    %1897 = vmatpush1.bf16.msra.mxu0 %v1716
    %1898 = vmatprep.subr.bf16.mxu0 %v1709
    %1899 = vmatpush1.bf16.msra.mxu0 %v1708
    %1900 = vmatprep.subr.bf16.mxu0 %v1701
    %1901 = vmatpush1.bf16.msra.mxu0 %v1700
    %1902 = vmatprep.subr.bf16.mxu0 %v1693
    %1903 = vmatpush1.bf16.msra.mxu0 %v1692
    %1904 = vmatprep.subr.bf16.mxu0 %v1685
    %1905 = vmatpush1.bf16.msra.mxu0 %v1684
    %1906 = vmatprep.subr.bf16.mxu0 0
    %1907 = vmatpush2.bf16.msra.mxu0 0
    %1908 = vmatprep.subr.bf16.mxu0 0
    %1909 = vmatpush2.bf16.msra.mxu0 0
    %1910 = vmatprep.subr.bf16.mxu0 0
    %1911 = vmatpush2.bf16.msra.mxu0 0
    %1912 = vmatprep.subr.bf16.mxu0 0
    %1913 = vmatpush2.bf16.msra.mxu0 0
    %1914 = vmatprep.subr.bf16.mxu0 0
    %1915 = vmatpush2.bf16.msra.mxu0 0
    %1916 = vmatprep.subr.bf16.mxu0 0
    %1917 = vmatpush2.bf16.msra.mxu0 0
    %1918 = vmatprep.subr.bf16.mxu0 0
    %1919 = vmatpush2.bf16.msra.mxu0 0
    %1920 = vmatprep.subr.bf16.mxu0 0
    %1921 = vmatpush2.bf16.msra.mxu0 0
    %1922 = vmatprep.mubr.bf16.mxu0 0
    %1923 = vmatmul.mubr.bf16.gmra.mxu0 %v1381
    %v1924 = vpop.f32.mrf.mxu0
    %v1925 = vadd.f32 %v1467, %v1924
    %v1926 = vpop.f32.mrf.mxu0
    %v1927 = vadd.f32 %v1471, %v1926
    %v1928 = vpop.f32.mrf.mxu0
    %v1929 = vpop.f32.mrf.mxu0
    %1930 = vdwg.mxu0
    %1931 = vmatprep.subr.bf16.mxu0 %v1743
    %1932 = vmatpush1.bf16.msra.mxu0 %v1742
    %1933 = vmatprep.subr.bf16.mxu0 %v1735
    %1934 = vmatpush1.bf16.msra.mxu0 %v1734
    %1935 = vmatprep.subr.bf16.mxu0 %v1727
    %1936 = vmatpush1.bf16.msra.mxu0 %v1726
    %1937 = vmatprep.subr.bf16.mxu0 %v1719
    %1938 = vmatpush1.bf16.msra.mxu0 %v1718
    %1939 = vmatprep.subr.bf16.mxu0 %v1711
    %1940 = vmatpush1.bf16.msra.mxu0 %v1710
    %1941 = vmatprep.subr.bf16.mxu0 %v1703
    %1942 = vmatpush1.bf16.msra.mxu0 %v1702
    %1943 = vmatprep.subr.bf16.mxu0 %v1695
    %1944 = vmatpush1.bf16.msra.mxu0 %v1694
    %1945 = vmatprep.subr.bf16.mxu0 %v1687
    %1946 = vmatpush1.bf16.msra.mxu0 %v1686
    %1947 = vmatprep.subr.bf16.mxu0 0
    %1948 = vmatpush2.bf16.msra.mxu0 0
    %1949 = vmatprep.subr.bf16.mxu0 0
    %1950 = vmatpush2.bf16.msra.mxu0 0
    %1951 = vmatprep.subr.bf16.mxu0 0
    %1952 = vmatpush2.bf16.msra.mxu0 0
    %1953 = vmatprep.subr.bf16.mxu0 0
    %1954 = vmatpush2.bf16.msra.mxu0 0
    %1955 = vmatprep.subr.bf16.mxu0 0
    %1956 = vmatpush2.bf16.msra.mxu0 0
    %1957 = vmatprep.subr.bf16.mxu0 0
    %1958 = vmatpush2.bf16.msra.mxu0 0
    %1959 = vmatprep.subr.bf16.mxu0 0
    %1960 = vmatpush2.bf16.msra.mxu0 0
    %1961 = vmatprep.subr.bf16.mxu0 0
    %1962 = vmatpush2.bf16.msra.mxu0 0
    %1963 = vmatprep.mubr.bf16.mxu0 0
    %1964 = vmatmul.mubr.bf16.gmra.mxu0 %v1381
    %v1965 = vpop.f32.mrf.mxu0
    %v1966 = vadd.f32 %v1475, %v1965
    %v1967 = vpop.f32.mrf.mxu0
    %v1968 = vadd.f32 %v1479, %v1967
    %v1969 = vpop.f32.mrf.mxu0
    %v1970 = vpop.f32.mrf.mxu0
    %1971 = vdwg.mxu0
    %v1972 = vxor.u32 %v1843, 2147483648
    %v1973 = vxor.u32 %v1845, 2147483648
    %v1974 = vxor.u32 %v1884, 2147483648
    %v1975 = vxor.u32 %v1886, 2147483648
    %v1976 = vxor.u32 %v1925, 2147483648
    %v1977 = vxor.u32 %v1927, 2147483648
    %v1978 = vxor.u32 %v1966, 2147483648
    %v1979 = vxor.u32 %v1968, 2147483648
    %v1980 = vmul.f32 %v1972, 1.442695
    %v1981 = vpow.pop %v1980
    %v1982 = vmul.f32 %v1973, 1.442695
    %v1983 = vpow.pop %v1982
    %v1984 = vmul.f32 %v1974, 1.442695
    %v1985 = vpow.pop %v1984
    %v1986 = vmul.f32 %v1975, 1.442695
    %v1987 = vpow.pop %v1986
    %v1988 = vmul.f32 %v1976, 1.442695
    %v1989 = vpow.pop %v1988
    %v1990 = vmul.f32 %v1977, 1.442695
    %v1991 = vpow.pop %v1990
    %v1992 = vmul.f32 %v1978, 1.442695
    %v1993 = vpow.pop %v1992
    %v1994 = vmul.f32 %v1979, 1.442695
    %v1995 = vpow.pop %v1994
    %v1996 = vadd.f32 %v1981, 1.0
    %v1997 = vadd.f32 %v1983, 1.0
    %v1998 = vadd.f32 %v1985, 1.0
    %v1999 = vadd.f32 %v1987, 1.0
    %v2000 = vadd.f32 %v1989, 1.0
    %v2001 = vadd.f32 %v1991, 1.0
    %v2002 = vadd.f32 %v1993, 1.0
    %v2003 = vadd.f32 %v1995, 1.0
    %v2004 = vrcp.pop %v1996
    %v2005 = vmul.f32 1.0, %v2004
    %v2006 = vrcp.pop %v1997
    %v2007 = vmul.f32 1.0, %v2006
    %v2008 = vrcp.pop %v1998
    %v2009 = vmul.f32 1.0, %v2008
    %v2010 = vrcp.pop %v1999
    %v2011 = vmul.f32 1.0, %v2010
    %v2012 = vrcp.pop %v2000
    %v2013 = vmul.f32 1.0, %v2012
    %v2014 = vrcp.pop %v2001
    %v2015 = vmul.f32 1.0, %v2014
    %v2016 = vrcp.pop %v2002
    %v2017 = vmul.f32 1.0, %v2016
    %v2018 = vrcp.pop %v2003
    %v2019 = vmul.f32 1.0, %v2018
    %v2020 = vld [vmem:[#allocation13] sm:$0xf]
    %v2021 = vld [vmem:[#allocation13 + $0x4] sm:$0xf]
    %v2022 = vld [vmem:[#allocation13 + $0x8] sm:$0xf]
    %v2023 = vld [vmem:[#allocation13 + $0xc] sm:$0xf]
    %v2024 = vld [vmem:[#allocation13 + $0x10] sm:$0xf]
    %v2025 = vld [vmem:[#allocation13 + $0x14] sm:$0xf]
    %v2026 = vld [vmem:[#allocation13 + $0x18] sm:$0xf]
    %v2027 = vld [vmem:[#allocation13 + $0x1c] sm:$0xf]
    %v2028 = vld [vmem:[#allocation13 + $0x20] sm:$0xf]
    %v2029 = vld [vmem:[#allocation13 + $0x24] sm:$0xf]
    %v2030 = vld [vmem:[#allocation13 + $0x28] sm:$0xf]
    %v2031 = vld [vmem:[#allocation13 + $0x2c] sm:$0xf]
    %v2032 = vld [vmem:[#allocation13 + $0x30] sm:$0xf]
    %v2033 = vld [vmem:[#allocation13 + $0x34] sm:$0xf]
    %v2034 = vld [vmem:[#allocation13 + $0x38] sm:$0xf]
    %v2035 = vld [vmem:[#allocation13 + $0x3c] sm:$0xf]
    %v2036 = vld [vmem:[#allocation13 + $0x40] sm:$0xf]
    %v2037 = vld [vmem:[#allocation13 + $0x44] sm:$0xf]
    %v2038 = vld [vmem:[#allocation13 + $0x48] sm:$0xf]
    %v2039 = vld [vmem:[#allocation13 + $0x4c] sm:$0xf]
    %v2040 = vld [vmem:[#allocation13 + $0x50] sm:$0xf]
    %v2041 = vld [vmem:[#allocation13 + $0x54] sm:$0xf]
    %v2042 = vld [vmem:[#allocation13 + $0x58] sm:$0xf]
    %v2043 = vld [vmem:[#allocation13 + $0x5c] sm:$0xf]
    %v2044 = vld [vmem:[#allocation13 + $0x60] sm:$0xf]
    %v2045 = vld [vmem:[#allocation13 + $0x64] sm:$0xf]
    %v2046 = vld [vmem:[#allocation13 + $0x68] sm:$0xf]
    %v2047 = vld [vmem:[#allocation13 + $0x6c] sm:$0xf]
    %v2048 = vld [vmem:[#allocation13 + $0x70] sm:$0xf]
    %v2049 = vld [vmem:[#allocation13 + $0x74] sm:$0xf]
    %v2050 = vld [vmem:[#allocation13 + $0x78] sm:$0xf]
    %v2051 = vld [vmem:[#allocation13 + $0x7c] sm:$0xf]
    %v2084 = vunpack.c.l.b16 %v2020
    %v2085 = vunpack.c.l.b16 %v2021
    %v2086 = vunpack.c.l.b16 %v2022
    %v2087 = vunpack.c.l.b16 %v2023
    %v2088 = vunpack.c.l.b16 %v2024
    %v2089 = vunpack.c.l.b16 %v2025
    %v2090 = vunpack.c.l.b16 %v2026
    %v2091 = vunpack.c.l.b16 %v2027
    %v2092 = vunpack.c.l.b16 %v2028
    %v2093 = vunpack.c.l.b16 %v2029
    %v2094 = vunpack.c.l.b16 %v2030
    %v2095 = vunpack.c.l.b16 %v2031
    %v2096 = vunpack.c.l.b16 %v2032
    %v2097 = vunpack.c.l.b16 %v2033
    %v2098 = vunpack.c.l.b16 %v2034
    %v2099 = vunpack.c.l.b16 %v2035
    %v2100 = vunpack.c.l.b16 %v2036
    %v2101 = vunpack.c.l.b16 %v2037
    %v2102 = vunpack.c.l.b16 %v2038
    %v2103 = vunpack.c.l.b16 %v2039
    %v2104 = vunpack.c.l.b16 %v2040
    %v2105 = vunpack.c.l.b16 %v2041
    %v2106 = vunpack.c.l.b16 %v2042
    %v2107 = vunpack.c.l.b16 %v2043
    %v2108 = vunpack.c.l.b16 %v2044
    %v2109 = vunpack.c.l.b16 %v2045
    %v2110 = vunpack.c.l.b16 %v2046
    %v2111 = vunpack.c.l.b16 %v2047
    %v2112 = vunpack.c.l.b16 %v2048
    %v2113 = vunpack.c.l.b16 %v2049
    %v2114 = vunpack.c.l.b16 %v2050
    %v2115 = vunpack.c.l.b16 %v2051
    %v2116 = vpack.c.b16 %v2085, %v2084
    %v2117 = vpack.c.b16 %v2087, %v2086
    %v2118 = vpack.c.b16 %v2089, %v2088
    %v2119 = vpack.c.b16 %v2091, %v2090
    %v2120 = vpack.c.b16 %v2093, %v2092
    %v2121 = vpack.c.b16 %v2095, %v2094
    %v2122 = vpack.c.b16 %v2097, %v2096
    %v2123 = vpack.c.b16 %v2099, %v2098
    %v2124 = vpack.c.b16 %v2101, %v2100
    %v2125 = vpack.c.b16 %v2103, %v2102
    %v2126 = vpack.c.b16 %v2105, %v2104
    %v2127 = vpack.c.b16 %v2107, %v2106
    %v2128 = vpack.c.b16 %v2109, %v2108
    %v2129 = vpack.c.b16 %v2111, %v2110
    %v2130 = vpack.c.b16 %v2113, %v2112
    %v2131 = vpack.c.b16 %v2115, %v2114
    %2148 = vmatprep.subr.bf16.mxu0 0
    %2149 = vmatpush1.bf16.msra.mxu0 %v2123
    %2150 = vmatprep.subr.bf16.mxu0 0
    %2151 = vmatpush1.bf16.msra.mxu0 %v2122
    %2152 = vmatprep.subr.bf16.mxu0 0
    %2153 = vmatpush1.bf16.msra.mxu0 %v2121
    %2154 = vmatprep.subr.bf16.mxu0 0
    %2155 = vmatpush1.bf16.msra.mxu0 %v2120
    %2156 = vmatprep.subr.bf16.mxu0 0
    %2157 = vmatpush1.bf16.msra.mxu0 %v2119
    %2158 = vmatprep.subr.bf16.mxu0 0
    %2159 = vmatpush1.bf16.msra.mxu0 %v2118
    %2160 = vmatprep.subr.bf16.mxu0 0
    %2161 = vmatpush1.bf16.msra.mxu0 %v2117
    %2162 = vmatprep.subr.bf16.mxu0 0
    %2163 = vmatpush1.bf16.msra.mxu0 %v2116
    %2164 = vmatprep.subr.bf16.mxu0 0
    %2165 = vmatpush2.bf16.msra.mxu0 %v2131
    %2166 = vmatprep.subr.bf16.mxu0 0
    %2167 = vmatpush2.bf16.msra.mxu0 %v2130
    %2168 = vmatprep.subr.bf16.mxu0 0
    %2169 = vmatpush2.bf16.msra.mxu0 %v2129
    %2170 = vmatprep.subr.bf16.mxu0 0
    %2171 = vmatpush2.bf16.msra.mxu0 %v2128
    %2172 = vmatprep.subr.bf16.mxu0 0
    %2173 = vmatpush2.bf16.msra.mxu0 %v2127
    %2174 = vmatprep.subr.bf16.mxu0 0
    %2175 = vmatpush2.bf16.msra.mxu0 %v2126
    %2176 = vmatprep.subr.bf16.mxu0 0
    %2177 = vmatpush2.bf16.msra.mxu0 %v2125
    %2178 = vmatprep.subr.bf16.mxu0 0
    %2179 = vmatpush2.bf16.msra.mxu0 %v2124
    %2180 = vmatprep.mubr.bf16.mxu0 %v1267
    %2181 = vmatmul.mubr.bf16.gmra.mxu0 %v1268
    %v2182 = vpop.f32.mrf.mxu0
    %v2183 = vadd.f32 0.0, %v2182
    %v2184 = vpop.f32.mrf.mxu0
    %v2185 = vpop.f32.mrf.mxu0
    %v2186 = vpop.f32.mrf.mxu0
    %2187 = vdwg.mxu0
    %v2188 = vadd.f32 %v1098, %v2183
    %v2189 = vld [vmem:[#allocation14 + $0xc] sm:$0x1]
    %v2191 = vlaneseq
    %v2192 = vshrl.u32 %v2191, 7
    %v2193 = vsub.s32 0, %v2192
    %v2194 = vrot.slane %v2189, %v2193
    %v2196 = vadd.f32 %v2188, %v2194
    %2197 = vst [vmem:[#allocation16] sm:$0xff] %v1266
    %2198 = vst [vmem:[#allocation16 + $0x8] sm:$0xff] %v1255
    %2199 = vst [vmem:[#allocation16 + $0x10] sm:$0xff] %v1257
    %2200 = vst [vmem:[#allocation17] sm:$0xff] %v2005
    %2201 = vst [vmem:[#allocation17 + $0x8] sm:$0xff] %v2007
    %2202 = vst [vmem:[#allocation17 + $0x10] sm:$0xff] %v2009
    %2203 = vst [vmem:[#allocation17 + $0x18] sm:$0xff] %v2011
    %2204 = vst [vmem:[#allocation17 + $0x20] sm:$0xff] %v2013
    %2205 = vst [vmem:[#allocation17 + $0x28] sm:$0xff] %v2015
    %2206 = vst [vmem:[#allocation17 + $0x30] sm:$0xff] %v2017
    %2207 = vst [vmem:[#allocation17 + $0x38] sm:$0xff] %v2019
    %2208 = vst [vmem:[#allocation19] sm:$0xff] %v2196
    // Predicated region
    $region66: #{tpu_custom_call.1} parent=1 // pred_check
      _
    $region67: #{tpu_custom_call.1} parent=1 // pred_check_branch
      %2210 = sbr.rel (0) target = $region69
    $region68: #{tpu_custom_call.1} parent=1 // pred_region
      %s2212 = ssub.s32 384, 384
      %2213 = vsyncadd [#allocation4], %s2212
      %s2215 = sshll.u32 [#allocation16], 4
      %s2216 = int_to_ptr.vmem [resolvable:$true] %s2215
      %2218 = dma.vmem_to_hbm [thread:$0]  %s2216, 384, %s8, [#allocation4]
    $region69: #{tpu_custom_call.1} parent=1 // pred_fallthru
      _
    // Predicated region
    $region70: #{tpu_custom_call.1} parent=1 // pred_check
      _
    $region71: #{tpu_custom_call.1} parent=1 // pred_check_branch
      %2220 = sbr.rel (0) target = $region73
    $region72: #{tpu_custom_call.1} parent=1 // pred_region
      %s2222 = ssub.s32 1024, 1024
      %2223 = vsyncadd [#allocation18], %s2222
      %s2225 = sshll.u32 [#allocation17], 4
      %s2226 = int_to_ptr.vmem [resolvable:$true] %s2225
      %2228 = dma.vmem_to_hbm [thread:$0]  %s2226, 1024, %s9, [#allocation18]
    $region73: #{tpu_custom_call.1} parent=1 // pred_fallthru
      _
    // Predicated region
    $region74: #{tpu_custom_call.1} parent=1 // pred_check
      _
    $region75: #{tpu_custom_call.1} parent=1 // pred_check_branch
      %2230 = sbr.rel (0) target = $region77
    $region76: #{tpu_custom_call.1} parent=1 // pred_region
      %s2232 = ssub.s32 128, 128
      %2233 = vsyncadd [#allocation18], %s2232
      %s2235 = sshll.u32 [#allocation19], 4
      %s2236 = int_to_ptr.vmem [resolvable:$true] %s2235
      %2238 = dma.vmem_to_hbm [thread:$0]  %s2236, 128, %s10, [#allocation18]
    $region77: #{tpu_custom_call.1} parent=1 // pred_fallthru
      _
    // Predicated region
    $region78: #{tpu_custom_call.1} parent=1 // pred_check
      _
    $region79: #{tpu_custom_call.1} parent=1 // pred_check_branch
      %2240 = sbr.rel (0) target = $region81
    $region80: #{tpu_custom_call.1} parent=1 // pred_region
      %2241 = dma.done [#allocation4], 384
    $region81: #{tpu_custom_call.1} parent=1 // pred_fallthru
      _
    // Predicated region
    $region82: #{tpu_custom_call.1} parent=1 // pred_check
      _
    $region83: #{tpu_custom_call.1} parent=1 // pred_check_branch
      %2243 = sbr.rel (0) target = $region85
    $region84: #{tpu_custom_call.1} parent=1 // pred_region
      %2244 = dma.done [#allocation18], 1024
    $region85: #{tpu_custom_call.1} parent=1 // pred_fallthru
      _
    // Predicated region
    $region86: #{tpu_custom_call.1} parent=1 // pred_check
      _
    $region87: #{tpu_custom_call.1} parent=1 // pred_check_branch
      %2246 = sbr.rel (0) target = $region89
    $region88: #{tpu_custom_call.1} parent=1 // pred_region
      %2247 = dma.done [#allocation18], 128
    $region89: #{tpu_custom_call.1} parent=1 // pred_fallthru
      _
    %2248 = vsyncpa [#allocation3], 1
    %2249 = vsyncpa [#allocation6], 1
    %2250 = vsyncpa [#allocation9], 1
    %2251 = vsyncpa [#allocation12], 1
    %2252 = vsyncpa [#allocation15], 1
    %2253 = vsyncpa [#allocation4], 1
    %2254 = vsyncpa [#allocation18], 1

</llo_original>
